<compile_context>
chip_gen: v6e
topology: v6e:2x2x1
jax: 0.10.0
libtpu: 0.0.40
codegen_flags: <defaults>
</compile_context>

<pallas_src>
import jax
import jax.numpy as jnp
import numpy as np
from jax import lax
from jax.experimental import pallas as pl
from jax.experimental.pallas import tpu as pltpu

embedding_dim = 20
hidden_size = 20
hidden_size2 = 20


def net_none_kernel(ids_ref, emb_ref, w_ih_ref, w_hh_ref, b_ref,
                    w1_ref, b1_ref, w2_ref, b2_ref, out_ref):
    # ids_ref : (T*B, 1) int32   time-major flattened token ids (row = t*B + b)
    # emb_ref : (V, E)   f32     embedding table, V = num_symbols + 1, id V-1 = pad
    # w_ih_ref: (E, 4H), w_hh_ref: (H, 4H), b_ref: (1, 4H)   gate order (i, f, o, g)
    # w1_ref  : (H, H2), b1_ref: (1, H2), w2_ref: (H2, A), b2_ref: (1, A)
    # out_ref : (B, A)
    N = ids_ref.shape[0]
    B = out_ref.shape[0]
    T = N // B
    V = emb_ref.shape[0]
    H = w_hh_ref.shape[0]
    pad_id = V - 1

    # ---- fused embedding gather + padding mask + input projection ----------
    # gather is done as a masked one-hot matmul on the MXU (guaranteed lowering,
    # and it lets the embedding table be pre-folded with w_ih).
    ids = ids_ref[...]                                          # (N, 1) int32
    col = lax.broadcasted_iota(jnp.int32, (N, V), 1)            # (N, V)
    onehot = jnp.where(jnp.logical_and(ids == col, ids != pad_id),
                       1.0, 0.0).astype(jnp.float32)            # (N, V)
    emb_w = jnp.dot(emb_ref[...], w_ih_ref[...],
                    preferred_element_type=jnp.float32)         # (V, 4H)
    # gx[n] = mask_n * (emb[id_n] @ w_ih) + b   (bias folded in once, pre-loop)
    gx = jnp.dot(onehot, emb_w,
                 preferred_element_type=jnp.float32) + b_ref[...]  # (N, 4H)

    w_hh = w_hh_ref[...]

    # ---- fully-unrolled LSTM recurrence + running time-sum -----------------
    h = jnp.zeros((B, H), jnp.float32)
    c = jnp.zeros((B, H), jnp.float32)
    acc = jnp.zeros((B, H), jnp.float32)
    for t in range(T):                                          # static unroll
        gates = gx[t * B:(t + 1) * B, :] + jnp.dot(
            h, w_hh, preferred_element_type=jnp.float32)        # (B, 4H)
        sig = jax.nn.sigmoid(gates[:, 0:3 * H])                 # one pass: i,f,o
        i_g = sig[:, 0:H]
        f_g = sig[:, H:2 * H]
        o_g = sig[:, 2 * H:3 * H]
        g_g = jnp.tanh(gates[:, 3 * H:4 * H])                   # one pass: g
        c = f_g * c + i_g * g_g
        h = o_g * jnp.tanh(c)
        acc = acc + h                                           # sum over time

    # ---- head: linear + relu, linear ---------------------------------------
    x5 = jnp.maximum(
        jnp.dot(acc, w1_ref[...], preferred_element_type=jnp.float32)
        + b1_ref[...], 0.0)
    # (B, A) = (2, 5): lane-sparse masked store, acceptable at this size.
    out_ref[...] = (jnp.dot(x5, w2_ref[...], preferred_element_type=jnp.float32)
                    + b2_ref[...])


def init_params(key, num_symbols, num_actions):
    # LSTM gate columns are stored in (i, f, o, g) order (kernel-friendly:
    # one sigmoid over the first 3H columns, one tanh over the last H).
    ks = jax.random.split(key, 8)
    E, H, H2 = embedding_dim, hidden_size, hidden_size2
    s = 0.1
    f32 = jnp.float32
    return dict(
        embedding=jax.random.normal(ks[0], (num_symbols + 1, E), f32) * s,
        w_ih=jax.random.normal(ks[1], (E, 4 * H), f32) * s,      # W_ih^T (i,f,o,g)
        w_hh=jax.random.normal(ks[2], (H, 4 * H), f32) * s,      # W_hh^T (i,f,o,g)
        b_lstm=jax.random.normal(ks[3], (1, 4 * H), f32) * s,    # b_ih + b_hh
        w1=jax.random.normal(ks[4], (H, H2), f32) * s,
        b1=jax.random.normal(ks[5], (1, H2), f32) * s,
        w2=jax.random.normal(ks[6], (H2, num_actions), f32) * s,
        b2=jax.random.normal(ks[7], (1, num_actions), f32) * s,
    )


def net_none_forward(x_ids, params):
    # Only glue left: flatten the int32 ids time-major (row = t*B + b).
    B, T = x_ids.shape
    ids_tm = jnp.transpose(x_ids, (1, 0)).reshape(T * B, 1).astype(jnp.int32)
    A = params["b2"].shape[-1]
    vmem = pl.BlockSpec(memory_space=pltpu.MemorySpace.VMEM)

    return pl.pallas_call(
        net_none_kernel,
        out_shape=jax.ShapeDtypeStruct((B, A), jnp.float32),
        in_specs=[vmem] * 9,
        out_specs=vmem,
    )(ids_tm, params["embedding"], params["w_ih"], params["w_hh"],
      params["b_lstm"], params["w1"], params["b1"], params["w2"], params["b2"])


def net_none_reference(x_ids, params, num_symbols):
    # pure-JAX reference mirroring the PyTorch forward (same (i,f,o,g) layout).
    x2 = jnp.take(params["embedding"], x_ids, axis=0)
    mask = (x_ids != num_symbols).astype(jnp.float32)[..., None]
    x2 = x2 * mask
    B, T, _ = x2.shape
    H = hidden_size

    def step(carry, x_t):
        h, c = carry
        gates = x_t @ params["w_ih"] + h @ params["w_hh"] + params["b_lstm"]
        i = jax.nn.sigmoid(gates[:, 0:H])
        f = jax.nn.sigmoid(gates[:, H:2 * H])
        o = jax.nn.sigmoid(gates[:, 2 * H:3 * H])
        g = jnp.tanh(gates[:, 3 * H:4 * H])
        c = f * c + i * g
        h = o * jnp.tanh(c)
        return (h, c), h

    (_, _), hs = lax.scan(step, (jnp.zeros((B, H)), jnp.zeros((B, H))),
                          jnp.transpose(x2, (1, 0, 2)))
    x4 = jnp.sum(hs, axis=0)
    x5 = jnp.maximum(x4 @ params["w1"] + params["b1"], 0.0)
    return x5 @ params["w2"] + params["b2"]


if __name__ == "__main__":
    num_symbols = 10
    num_actions = 5
    B, T = 2, 8

    key = jax.random.PRNGKey(0)
    k_param, k_x = jax.random.split(key)
    params = init_params(k_param, num_symbols, num_actions)
    # ids in [0, num_symbols]; id == num_symbols acts as the padding symbol
    x_ids = jax.random.randint(k_x, (B, T), 0, num_symbols + 1, dtype=jnp.int32)

    out = net_none_forward(x_ids, params)
    out = jax.block_until_ready(out)

    ref = jax.block_until_ready(net_none_reference(x_ids, params, num_symbols))
    np.testing.assert_allclose(np.asarray(out), np.asarray(ref),
                               rtol=2e-3, atol=2e-3)
    print("KERNEL_OK")
</pallas_src>

<mosaic_0001>
module attributes {stable_mosaic.version = 11 : i64} {
  func.func @net_none_kernel(%arg0: memref<16x1xi32, #tpu.memory_space<vmem>>, %arg1: memref<11x20xf32, #tpu.memory_space<vmem>>, %arg2: memref<20x80xf32, #tpu.memory_space<vmem>>, %arg3: memref<20x80xf32, #tpu.memory_space<vmem>>, %arg4: memref<1x80xf32, #tpu.memory_space<vmem>>, %arg5: memref<20x20xf32, #tpu.memory_space<vmem>>, %arg6: memref<1x20xf32, #tpu.memory_space<vmem>>, %arg7: memref<20x5xf32, #tpu.memory_space<vmem>>, %arg8: memref<1x5xf32, #tpu.memory_space<vmem>>, %arg9: memref<2x5xf32, #tpu.memory_space<vmem>>) attributes {dimension_semantics = [], scalar_prefetch = 0 : i64, scratch_operands = 0 : i64, tpu.core_type = #tpu.core_type<tc>} {
    %c0 = arith.constant 0 : index
    %c0_0 = arith.constant 0 : index
    %0 = vector.load %arg0[%c0, %c0_0] : memref<16x1xi32, #tpu.memory_space<vmem>>, vector<16x1xi32>
    %1 = tpu.iota {dimensions = array<i32: 1>} : vector<16x11xi32>
    %2 = vector.broadcast %0 : vector<16x1xi32> to vector<16x11xi32>
    %3 = arith.cmpi eq, %2, %1 : vector<16x11xi32>
    %c10_i32 = arith.constant 10 : i32
    %4 = vector.broadcast %c10_i32 : i32 to vector<16x1xi32>
    %5 = arith.cmpi ne, %0, %4 : vector<16x1xi32>
    %6 = vector.broadcast %5 : vector<16x1xi1> to vector<16x11xi1>
    %7 = arith.andi %3, %6 : vector<16x11xi1>
    %cst = arith.constant 1.000000e+00 : f32
    %cst_1 = arith.constant 0.000000e+00 : f32
    %8 = vector.broadcast %cst : f32 to vector<16x11xf32>
    %9 = vector.broadcast %cst_1 : f32 to vector<16x11xf32>
    %10 = arith.select %7, %8, %9 : vector<16x11xi1>, vector<16x11xf32>
    %c0_2 = arith.constant 0 : index
    %c0_3 = arith.constant 0 : index
    %11 = vector.load %arg1[%c0_2, %c0_3] : memref<11x20xf32, #tpu.memory_space<vmem>>, vector<11x20xf32>
    %c0_4 = arith.constant 0 : index
    %c0_5 = arith.constant 0 : index
    %12 = vector.load %arg2[%c0_4, %c0_5] : memref<20x80xf32, #tpu.memory_space<vmem>>, vector<20x80xf32>
    %cst_6 = arith.constant dense<0.000000e+00> : vector<11x80xf32>
    %13 = tpu.matmul %11, %12, %cst_6 {dimension_numbers = #tpu.dot_dimension_numbers<[1], [0], [0], [1], [0, 0, 1, 1], [], []>} : vector<11x20xf32>, vector<20x80xf32>, vector<11x80xf32> -> vector<11x80xf32>
    %cst_7 = arith.constant dense<0.000000e+00> : vector<16x80xf32>
    %14 = tpu.matmul %10, %13, %cst_7 {dimension_numbers = #tpu.dot_dimension_numbers<[1], [0], [0], [1], [0, 0, 1, 1], [], []>} : vector<16x11xf32>, vector<11x80xf32>, vector<16x80xf32> -> vector<16x80xf32>
    %c0_8 = arith.constant 0 : index
    %c0_9 = arith.constant 0 : index
    %15 = vector.load %arg4[%c0_8, %c0_9] : memref<1x80xf32, #tpu.memory_space<vmem>>, vector<1x80xf32>
    %16 = vector.broadcast %15 : vector<1x80xf32> to vector<16x80xf32>
    %17 = arith.addf %14, %16 : vector<16x80xf32>
    %c0_10 = arith.constant 0 : index
    %c0_11 = arith.constant 0 : index
    %18 = vector.load %arg3[%c0_10, %c0_11] : memref<20x80xf32, #tpu.memory_space<vmem>>, vector<20x80xf32>
    %cst_12 = arith.constant 0.000000e+00 : f32
    %19 = vector.broadcast %cst_12 : f32 to vector<2x20xf32>
    %cst_13 = arith.constant 0.000000e+00 : f32
    %20 = vector.broadcast %cst_13 : f32 to vector<2x20xf32>
    %cst_14 = arith.constant 0.000000e+00 : f32
    %21 = vector.broadcast %cst_14 : f32 to vector<2x20xf32>
    %22 = vector.extract_strided_slice %17 {offsets = [0, 0], sizes = [2, 80], strides = [1, 1]} : vector<16x80xf32> to vector<2x80xf32>
    %cst_15 = arith.constant dense<0.000000e+00> : vector<2x80xf32>
    %23 = tpu.matmul %19, %18, %cst_15 {dimension_numbers = #tpu.dot_dimension_numbers<[1], [0], [0], [1], [0, 0, 1, 1], [], []>} : vector<2x20xf32>, vector<20x80xf32>, vector<2x80xf32> -> vector<2x80xf32>
    %24 = arith.addf %22, %23 : vector<2x80xf32>
    %25 = vector.extract_strided_slice %24 {offsets = [0, 0], sizes = [2, 60], strides = [1, 1]} : vector<2x80xf32> to vector<2x60xf32>
    %26 = arith.negf %25 : vector<2x60xf32>
    %27 = math.exp %26 : vector<2x60xf32>
    %cst_16 = arith.constant 1.000000e+00 : f32
    %28 = vector.broadcast %cst_16 : f32 to vector<2x60xf32>
    %29 = arith.addf %28, %27 : vector<2x60xf32>
    %30 = arith.divf %28, %29 : vector<2x60xf32>
    %31 = vector.extract_strided_slice %30 {offsets = [0, 0], sizes = [2, 20], strides = [1, 1]} : vector<2x60xf32> to vector<2x20xf32>
    %32 = vector.extract_strided_slice %30 {offsets = [0, 20], sizes = [2, 20], strides = [1, 1]} : vector<2x60xf32> to vector<2x20xf32>
    %33 = vector.extract_strided_slice %30 {offsets = [0, 40], sizes = [2, 20], strides = [1, 1]} : vector<2x60xf32> to vector<2x20xf32>
    %34 = vector.extract_strided_slice %24 {offsets = [0, 60], sizes = [2, 20], strides = [1, 1]} : vector<2x80xf32> to vector<2x20xf32>
    %35 = math.tanh %34 : vector<2x20xf32>
    %36 = arith.mulf %32, %20 : vector<2x20xf32>
    %37 = arith.mulf %31, %35 : vector<2x20xf32>
    %38 = arith.addf %36, %37 : vector<2x20xf32>
    %39 = math.tanh %38 : vector<2x20xf32>
    %40 = arith.mulf %33, %39 : vector<2x20xf32>
    %41 = arith.addf %21, %40 : vector<2x20xf32>
    %42 = vector.extract_strided_slice %17 {offsets = [2, 0], sizes = [2, 80], strides = [1, 1]} : vector<16x80xf32> to vector<2x80xf32>
    %cst_17 = arith.constant dense<0.000000e+00> : vector<2x80xf32>
    %43 = tpu.matmul %40, %18, %cst_17 {dimension_numbers = #tpu.dot_dimension_numbers<[1], [0], [0], [1], [0, 0, 1, 1], [], []>} : vector<2x20xf32>, vector<20x80xf32>, vector<2x80xf32> -> vector<2x80xf32>
    %44 = arith.addf %42, %43 : vector<2x80xf32>
    %45 = vector.extract_strided_slice %44 {offsets = [0, 0], sizes = [2, 60], strides = [1, 1]} : vector<2x80xf32> to vector<2x60xf32>
    %46 = arith.negf %45 : vector<2x60xf32>
    %47 = math.exp %46 : vector<2x60xf32>
    %cst_18 = arith.constant 1.000000e+00 : f32
    %48 = vector.broadcast %cst_18 : f32 to vector<2x60xf32>
    %49 = arith.addf %48, %47 : vector<2x60xf32>
    %50 = arith.divf %48, %49 : vector<2x60xf32>
    %51 = vector.extract_strided_slice %50 {offsets = [0, 0], sizes = [2, 20], strides = [1, 1]} : vector<2x60xf32> to vector<2x20xf32>
    %52 = vector.extract_strided_slice %50 {offsets = [0, 20], sizes = [2, 20], strides = [1, 1]} : vector<2x60xf32> to vector<2x20xf32>
    %53 = vector.extract_strided_slice %50 {offsets = [0, 40], sizes = [2, 20], strides = [1, 1]} : vector<2x60xf32> to vector<2x20xf32>
    %54 = vector.extract_strided_slice %44 {offsets = [0, 60], sizes = [2, 20], strides = [1, 1]} : vector<2x80xf32> to vector<2x20xf32>
    %55 = math.tanh %54 : vector<2x20xf32>
    %56 = arith.mulf %52, %38 : vector<2x20xf32>
    %57 = arith.mulf %51, %55 : vector<2x20xf32>
    %58 = arith.addf %56, %57 : vector<2x20xf32>
    %59 = math.tanh %58 : vector<2x20xf32>
    %60 = arith.mulf %53, %59 : vector<2x20xf32>
    %61 = arith.addf %41, %60 : vector<2x20xf32>
    %62 = vector.extract_strided_slice %17 {offsets = [4, 0], sizes = [2, 80], strides = [1, 1]} : vector<16x80xf32> to vector<2x80xf32>
    %cst_19 = arith.constant dense<0.000000e+00> : vector<2x80xf32>
    %63 = tpu.matmul %60, %18, %cst_19 {dimension_numbers = #tpu.dot_dimension_numbers<[1], [0], [0], [1], [0, 0, 1, 1], [], []>} : vector<2x20xf32>, vector<20x80xf32>, vector<2x80xf32> -> vector<2x80xf32>
    %64 = arith.addf %62, %63 : vector<2x80xf32>
    %65 = vector.extract_strided_slice %64 {offsets = [0, 0], sizes = [2, 60], strides = [1, 1]} : vector<2x80xf32> to vector<2x60xf32>
    %66 = arith.negf %65 : vector<2x60xf32>
    %67 = math.exp %66 : vector<2x60xf32>
    %cst_20 = arith.constant 1.000000e+00 : f32
    %68 = vector.broadcast %cst_20 : f32 to vector<2x60xf32>
    %69 = arith.addf %68, %67 : vector<2x60xf32>
    %70 = arith.divf %68, %69 : vector<2x60xf32>
    %71 = vector.extract_strided_slice %70 {offsets = [0, 0], sizes = [2, 20], strides = [1, 1]} : vector<2x60xf32> to vector<2x20xf32>
    %72 = vector.extract_strided_slice %70 {offsets = [0, 20], sizes = [2, 20], strides = [1, 1]} : vector<2x60xf32> to vector<2x20xf32>
    %73 = vector.extract_strided_slice %70 {offsets = [0, 40], sizes = [2, 20], strides = [1, 1]} : vector<2x60xf32> to vector<2x20xf32>
    %74 = vector.extract_strided_slice %64 {offsets = [0, 60], sizes = [2, 20], strides = [1, 1]} : vector<2x80xf32> to vector<2x20xf32>
    %75 = math.tanh %74 : vector<2x20xf32>
    %76 = arith.mulf %72, %58 : vector<2x20xf32>
    %77 = arith.mulf %71, %75 : vector<2x20xf32>
    %78 = arith.addf %76, %77 : vector<2x20xf32>
    %79 = math.tanh %78 : vector<2x20xf32>
    %80 = arith.mulf %73, %79 : vector<2x20xf32>
    %81 = arith.addf %61, %80 : vector<2x20xf32>
    %82 = vector.extract_strided_slice %17 {offsets = [6, 0], sizes = [2, 80], strides = [1, 1]} : vector<16x80xf32> to vector<2x80xf32>
    %cst_21 = arith.constant dense<0.000000e+00> : vector<2x80xf32>
    %83 = tpu.matmul %80, %18, %cst_21 {dimension_numbers = #tpu.dot_dimension_numbers<[1], [0], [0], [1], [0, 0, 1, 1], [], []>} : vector<2x20xf32>, vector<20x80xf32>, vector<2x80xf32> -> vector<2x80xf32>
    %84 = arith.addf %82, %83 : vector<2x80xf32>
    %85 = vector.extract_strided_slice %84 {offsets = [0, 0], sizes = [2, 60], strides = [1, 1]} : vector<2x80xf32> to vector<2x60xf32>
    %86 = arith.negf %85 : vector<2x60xf32>
    %87 = math.exp %86 : vector<2x60xf32>
    %cst_22 = arith.constant 1.000000e+00 : f32
    %88 = vector.broadcast %cst_22 : f32 to vector<2x60xf32>
    %89 = arith.addf %88, %87 : vector<2x60xf32>
    %90 = arith.divf %88, %89 : vector<2x60xf32>
    %91 = vector.extract_strided_slice %90 {offsets = [0, 0], sizes = [2, 20], strides = [1, 1]} : vector<2x60xf32> to vector<2x20xf32>
    %92 = vector.extract_strided_slice %90 {offsets = [0, 20], sizes = [2, 20], strides = [1, 1]} : vector<2x60xf32> to vector<2x20xf32>
    %93 = vector.extract_strided_slice %90 {offsets = [0, 40], sizes = [2, 20], strides = [1, 1]} : vector<2x60xf32> to vector<2x20xf32>
    %94 = vector.extract_strided_slice %84 {offsets = [0, 60], sizes = [2, 20], strides = [1, 1]} : vector<2x80xf32> to vector<2x20xf32>
    %95 = math.tanh %94 : vector<2x20xf32>
    %96 = arith.mulf %92, %78 : vector<2x20xf32>
    %97 = arith.mulf %91, %95 : vector<2x20xf32>
    %98 = arith.addf %96, %97 : vector<2x20xf32>
    %99 = math.tanh %98 : vector<2x20xf32>
    %100 = arith.mulf %93, %99 : vector<2x20xf32>
    %101 = arith.addf %81, %100 : vector<2x20xf32>
    %102 = vector.extract_strided_slice %17 {offsets = [8, 0], sizes = [2, 80], strides = [1, 1]} : vector<16x80xf32> to vector<2x80xf32>
    %cst_23 = arith.constant dense<0.000000e+00> : vector<2x80xf32>
    %103 = tpu.matmul %100, %18, %cst_23 {dimension_numbers = #tpu.dot_dimension_numbers<[1], [0], [0], [1], [0, 0, 1, 1], [], []>} : vector<2x20xf32>, vector<20x80xf32>, vector<2x80xf32> -> vector<2x80xf32>
    %104 = arith.addf %102, %103 : vector<2x80xf32>
    %105 = vector.extract_strided_slice %104 {offsets = [0, 0], sizes = [2, 60], strides = [1, 1]} : vector<2x80xf32> to vector<2x60xf32>
    %106 = arith.negf %105 : vector<2x60xf32>
    %107 = math.exp %106 : vector<2x60xf32>
    %cst_24 = arith.constant 1.000000e+00 : f32
    %108 = vector.broadcast %cst_24 : f32 to vector<2x60xf32>
    %109 = arith.addf %108, %107 : vector<2x60xf32>
    %110 = arith.divf %108, %109 : vector<2x60xf32>
    %111 = vector.extract_strided_slice %110 {offsets = [0, 0], sizes = [2, 20], strides = [1, 1]} : vector<2x60xf32> to vector<2x20xf32>
    %112 = vector.extract_strided_slice %110 {offsets = [0, 20], sizes = [2, 20], strides = [1, 1]} : vector<2x60xf32> to vector<2x20xf32>
    %113 = vector.extract_strided_slice %110 {offsets = [0, 40], sizes = [2, 20], strides = [1, 1]} : vector<2x60xf32> to vector<2x20xf32>
    %114 = vector.extract_strided_slice %104 {offsets = [0, 60], sizes = [2, 20], strides = [1, 1]} : vector<2x80xf32> to vector<2x20xf32>
    %115 = math.tanh %114 : vector<2x20xf32>
    %116 = arith.mulf %112, %98 : vector<2x20xf32>
    %117 = arith.mulf %111, %115 : vector<2x20xf32>
    %118 = arith.addf %116, %117 : vector<2x20xf32>
    %119 = math.tanh %118 : vector<2x20xf32>
    %120 = arith.mulf %113, %119 : vector<2x20xf32>
    %121 = arith.addf %101, %120 : vector<2x20xf32>
    %122 = vector.extract_strided_slice %17 {offsets = [10, 0], sizes = [2, 80], strides = [1, 1]} : vector<16x80xf32> to vector<2x80xf32>
    %cst_25 = arith.constant dense<0.000000e+00> : vector<2x80xf32>
    %123 = tpu.matmul %120, %18, %cst_25 {dimension_numbers = #tpu.dot_dimension_numbers<[1], [0], [0], [1], [0, 0, 1, 1], [], []>} : vector<2x20xf32>, vector<20x80xf32>, vector<2x80xf32> -> vector<2x80xf32>
    %124 = arith.addf %122, %123 : vector<2x80xf32>
    %125 = vector.extract_strided_slice %124 {offsets = [0, 0], sizes = [2, 60], strides = [1, 1]} : vector<2x80xf32> to vector<2x60xf32>
    %126 = arith.negf %125 : vector<2x60xf32>
    %127 = math.exp %126 : vector<2x60xf32>
    %cst_26 = arith.constant 1.000000e+00 : f32
    %128 = vector.broadcast %cst_26 : f32 to vector<2x60xf32>
    %129 = arith.addf %128, %127 : vector<2x60xf32>
    %130 = arith.divf %128, %129 : vector<2x60xf32>
    %131 = vector.extract_strided_slice %130 {offsets = [0, 0], sizes = [2, 20], strides = [1, 1]} : vector<2x60xf32> to vector<2x20xf32>
    %132 = vector.extract_strided_slice %130 {offsets = [0, 20], sizes = [2, 20], strides = [1, 1]} : vector<2x60xf32> to vector<2x20xf32>
    %133 = vector.extract_strided_slice %130 {offsets = [0, 40], sizes = [2, 20], strides = [1, 1]} : vector<2x60xf32> to vector<2x20xf32>
    %134 = vector.extract_strided_slice %124 {offsets = [0, 60], sizes = [2, 20], strides = [1, 1]} : vector<2x80xf32> to vector<2x20xf32>
    %135 = math.tanh %134 : vector<2x20xf32>
    %136 = arith.mulf %132, %118 : vector<2x20xf32>
    %137 = arith.mulf %131, %135 : vector<2x20xf32>
    %138 = arith.addf %136, %137 : vector<2x20xf32>
    %139 = math.tanh %138 : vector<2x20xf32>
    %140 = arith.mulf %133, %139 : vector<2x20xf32>
    %141 = arith.addf %121, %140 : vector<2x20xf32>
    %142 = vector.extract_strided_slice %17 {offsets = [12, 0], sizes = [2, 80], strides = [1, 1]} : vector<16x80xf32> to vector<2x80xf32>
    %cst_27 = arith.constant dense<0.000000e+00> : vector<2x80xf32>
    %143 = tpu.matmul %140, %18, %cst_27 {dimension_numbers = #tpu.dot_dimension_numbers<[1], [0], [0], [1], [0, 0, 1, 1], [], []>} : vector<2x20xf32>, vector<20x80xf32>, vector<2x80xf32> -> vector<2x80xf32>
    %144 = arith.addf %142, %143 : vector<2x80xf32>
    %145 = vector.extract_strided_slice %144 {offsets = [0, 0], sizes = [2, 60], strides = [1, 1]} : vector<2x80xf32> to vector<2x60xf32>
    %146 = arith.negf %145 : vector<2x60xf32>
    %147 = math.exp %146 : vector<2x60xf32>
    %cst_28 = arith.constant 1.000000e+00 : f32
    %148 = vector.broadcast %cst_28 : f32 to vector<2x60xf32>
    %149 = arith.addf %148, %147 : vector<2x60xf32>
    %150 = arith.divf %148, %149 : vector<2x60xf32>
    %151 = vector.extract_strided_slice %150 {offsets = [0, 0], sizes = [2, 20], strides = [1, 1]} : vector<2x60xf32> to vector<2x20xf32>
    %152 = vector.extract_strided_slice %150 {offsets = [0, 20], sizes = [2, 20], strides = [1, 1]} : vector<2x60xf32> to vector<2x20xf32>
    %153 = vector.extract_strided_slice %150 {offsets = [0, 40], sizes = [2, 20], strides = [1, 1]} : vector<2x60xf32> to vector<2x20xf32>
    %154 = vector.extract_strided_slice %144 {offsets = [0, 60], sizes = [2, 20], strides = [1, 1]} : vector<2x80xf32> to vector<2x20xf32>
    %155 = math.tanh %154 : vector<2x20xf32>
    %156 = arith.mulf %152, %138 : vector<2x20xf32>
    %157 = arith.mulf %151, %155 : vector<2x20xf32>
    %158 = arith.addf %156, %157 : vector<2x20xf32>
    %159 = math.tanh %158 : vector<2x20xf32>
    %160 = arith.mulf %153, %159 : vector<2x20xf32>
    %161 = arith.addf %141, %160 : vector<2x20xf32>
    %162 = vector.extract_strided_slice %17 {offsets = [14, 0], sizes = [2, 80], strides = [1, 1]} : vector<16x80xf32> to vector<2x80xf32>
    %cst_29 = arith.constant dense<0.000000e+00> : vector<2x80xf32>
    %163 = tpu.matmul %160, %18, %cst_29 {dimension_numbers = #tpu.dot_dimension_numbers<[1], [0], [0], [1], [0, 0, 1, 1], [], []>} : vector<2x20xf32>, vector<20x80xf32>, vector<2x80xf32> -> vector<2x80xf32>
    %164 = arith.addf %162, %163 : vector<2x80xf32>
    %165 = vector.extract_strided_slice %164 {offsets = [0, 0], sizes = [2, 60], strides = [1, 1]} : vector<2x80xf32> to vector<2x60xf32>
    %166 = arith.negf %165 : vector<2x60xf32>
    %167 = math.exp %166 : vector<2x60xf32>
    %cst_30 = arith.constant 1.000000e+00 : f32
    %168 = vector.broadcast %cst_30 : f32 to vector<2x60xf32>
    %169 = arith.addf %168, %167 : vector<2x60xf32>
    %170 = arith.divf %168, %169 : vector<2x60xf32>
    %171 = vector.extract_strided_slice %170 {offsets = [0, 0], sizes = [2, 20], strides = [1, 1]} : vector<2x60xf32> to vector<2x20xf32>
    %172 = vector.extract_strided_slice %170 {offsets = [0, 20], sizes = [2, 20], strides = [1, 1]} : vector<2x60xf32> to vector<2x20xf32>
    %173 = vector.extract_strided_slice %170 {offsets = [0, 40], sizes = [2, 20], strides = [1, 1]} : vector<2x60xf32> to vector<2x20xf32>
    %174 = vector.extract_strided_slice %164 {offsets = [0, 60], sizes = [2, 20], strides = [1, 1]} : vector<2x80xf32> to vector<2x20xf32>
    %175 = math.tanh %174 : vector<2x20xf32>
    %176 = arith.mulf %172, %158 : vector<2x20xf32>
    %177 = arith.mulf %171, %175 : vector<2x20xf32>
    %178 = arith.addf %176, %177 : vector<2x20xf32>
    %179 = math.tanh %178 : vector<2x20xf32>
    %180 = arith.mulf %173, %179 : vector<2x20xf32>
    %181 = arith.addf %161, %180 : vector<2x20xf32>
    %c0_31 = arith.constant 0 : index
    %c0_32 = arith.constant 0 : index
    %182 = vector.load %arg5[%c0_31, %c0_32] : memref<20x20xf32, #tpu.memory_space<vmem>>, vector<20x20xf32>
    %cst_33 = arith.constant dense<0.000000e+00> : vector<2x20xf32>
    %183 = tpu.matmul %181, %182, %cst_33 {dimension_numbers = #tpu.dot_dimension_numbers<[1], [0], [0], [1], [0, 0, 1, 1], [], []>} : vector<2x20xf32>, vector<20x20xf32>, vector<2x20xf32> -> vector<2x20xf32>
    %c0_34 = arith.constant 0 : index
    %c0_35 = arith.constant 0 : index
    %184 = vector.load %arg6[%c0_34, %c0_35] : memref<1x20xf32, #tpu.memory_space<vmem>>, vector<1x20xf32>
    %185 = vector.broadcast %184 : vector<1x20xf32> to vector<2x20xf32>
    %186 = arith.addf %183, %185 : vector<2x20xf32>
    %cst_36 = arith.constant 0.000000e+00 : f32
    %187 = vector.broadcast %cst_36 : f32 to vector<2x20xf32>
    %188 = arith.maximumf %186, %187 : vector<2x20xf32>
    %c0_37 = arith.constant 0 : index
    %c0_38 = arith.constant 0 : index
    %189 = vector.load %arg7[%c0_37, %c0_38] : memref<20x5xf32, #tpu.memory_space<vmem>>, vector<20x5xf32>
    %cst_39 = arith.constant dense<0.000000e+00> : vector<2x5xf32>
    %190 = tpu.matmul %188, %189, %cst_39 {dimension_numbers = #tpu.dot_dimension_numbers<[1], [0], [0], [1], [0, 0, 1, 1], [], []>} : vector<2x20xf32>, vector<20x5xf32>, vector<2x5xf32> -> vector<2x5xf32>
    %c0_40 = arith.constant 0 : index
    %c0_41 = arith.constant 0 : index
    %191 = vector.load %arg8[%c0_40, %c0_41] : memref<1x5xf32, #tpu.memory_space<vmem>>, vector<1x5xf32>
    %192 = vector.broadcast %191 : vector<1x5xf32> to vector<2x5xf32>
    %193 = arith.addf %190, %192 : vector<2x5xf32>
    %c0_42 = arith.constant 0 : index
    %c0_43 = arith.constant 0 : index
    %194 = vector.load %arg9[%c0_42, %c0_43] : memref<2x5xf32, #tpu.memory_space<vmem>>, vector<2x5xf32>
    tpu.vector_store %arg9[%c0_42, %c0_43], %193 {strides = array<i32>} : memref<2x5xf32, #tpu.memory_space<vmem>>, vector<2x5xf32>,
    return
  }
}

</mosaic_0001>

<llo_original>
// kernel: tpu_custom_call.1
$region0: #{tpu_custom_call.1}
  #allocation0 [shape = 'u32[]', space=smem, size = 0x4, offset = 0x4, fixed_abs, tag = 'smem constant byte address 0x4 - core index']
  #allocation1 [shape = 'u32[144,128]{1,0:T(1,128)}', space=vmem, size = 0x12000, scoped, tag = 'internal scratch']
  %s0 = inlined_call_operand.vmem [shape: s32[16,1], index: 0, kind: input, shape index: {}]
  %s1 = inlined_call_operand.hbm [shape: f32[11,20], index: 1, kind: input, shape index: {}]
  %s2 = inlined_call_operand.vmem [shape: f32[20,80], index: 2, kind: input, shape index: {}]
  %s3 = inlined_call_operand.vmem [shape: f32[20,80], index: 3, kind: input, shape index: {}]
  %s4 = inlined_call_operand.hbm [shape: f32[1,80], index: 4, kind: input, shape index: {}]
  %s5 = inlined_call_operand.hbm [shape: f32[20,20], index: 5, kind: input, shape index: {}]
  %s6 = inlined_call_operand.vmem [shape: f32[1,20], index: 6, kind: input, shape index: {}]
  %s7 = inlined_call_operand.vmem [shape: f32[20,5], index: 7, kind: input, shape index: {}]
  %s8 = inlined_call_operand.vmem [shape: f32[1,5], index: 8, kind: input, shape index: {}]
  %s9 = inlined_call_operand.hbm [shape: f32[2,5], index: 9, kind: output, shape index: {}]
  %s10 = sld [smem:[#allocation0]]
  $region58: #{tpu_custom_call.1} parent=0
    _
  %s12 = ssub.s32 1, %s10
  %s13 = scalar_select 0, %s12, %s10
  $region1: #{tpu_custom_call.1} parent=0
    #allocation2 [shape = 'u8[8192]{0}', space=vmem, size = 0x2000, scoped, tag = 'input window, operand 1, single buffered']
    #allocation3 [shape = 's32[1]{0}', space=sflag, size = 0x4, scoped, tag = 'scoped memory for tpu_custom_call.1']
    #allocation4 [shape = 's32[1]{0}', space=sflag, size = 0x4, scoped, tag = 'scoped memory for tpu_custom_call.1']
    #allocation5 [shape = 'u8[512]{0}', space=vmem, size = 0x400, scoped, tag = 'input window, operand 4, single buffered']
    #allocation6 [shape = 's32[1]{0}', space=sflag, size = 0x4, scoped, tag = 'scoped memory for tpu_custom_call.1']
    #allocation7 [shape = 'u8[12288]{0}', space=vmem, size = 0x3000, scoped, tag = 'input window, operand 5, single buffered']
    #allocation8 [shape = 'u8[1024]{0}', space=vmem, size = 0x400, scoped, tag = 'output window, operand 0, single buffered']
    %14 = vsyncpa [#allocation3], 0
    %15 = vsyncpa [#allocation6], 0
    %16 = vsyncpa [#allocation4], 0
    // Predicated region
    $region2: #{tpu_custom_call.1} parent=1 // pred_check
      _
    $region3: #{tpu_custom_call.1} parent=1 // pred_check_branch
      %18 = sbr.rel (0) target = $region5
    $region4: #{tpu_custom_call.1} parent=1 // pred_region
      _
    $region5: #{tpu_custom_call.1} parent=1 // pred_fallthru
      _
    // Predicated region
    $region6: #{tpu_custom_call.1} parent=1 // pred_check
      _
    $region7: #{tpu_custom_call.1} parent=1 // pred_check_branch
      %20 = sbr.rel (0) target = $region9
    $region8: #{tpu_custom_call.1} parent=1 // pred_region
      %s22 = ssub.s32 256, 256
      %23 = vsyncadd [#allocation3], %s22
      %s24 = sshll.u32 [#allocation2], 4
      %s25 = int_to_ptr.vmem [resolvable:$true] %s24
      %30 = dma.hbm_to_vmem [thread:$0]  %s1, 256, %s25, [#allocation3], 128, 128, 8
    $region9: #{tpu_custom_call.1} parent=1 // pred_fallthru
      _
    // Predicated region
    $region10: #{tpu_custom_call.1} parent=1 // pred_check
      _
    $region11: #{tpu_custom_call.1} parent=1 // pred_check_branch
      %32 = sbr.rel (0) target = $region13
    $region12: #{tpu_custom_call.1} parent=1 // pred_region
      _
    $region13: #{tpu_custom_call.1} parent=1 // pred_fallthru
      _
    // Predicated region
    $region14: #{tpu_custom_call.1} parent=1 // pred_check
      _
    $region15: #{tpu_custom_call.1} parent=1 // pred_check_branch
      %34 = sbr.rel (0) target = $region17
    $region16: #{tpu_custom_call.1} parent=1 // pred_region
      _
    $region17: #{tpu_custom_call.1} parent=1 // pred_fallthru
      _
    // Predicated region
    $region18: #{tpu_custom_call.1} parent=1 // pred_check
      _
    $region19: #{tpu_custom_call.1} parent=1 // pred_check_branch
      %36 = sbr.rel (0) target = $region21
    $region20: #{tpu_custom_call.1} parent=1 // pred_region
      %s38 = ssub.s32 16, 16
      %39 = vsyncadd [#allocation6], %s38
      %s41 = sshll.u32 [#allocation5], 4
      %s42 = int_to_ptr.vmem [resolvable:$true] %s41
      %44 = dma.hbm_to_vmem [thread:$0]  %s4, 16, %s42, [#allocation6]
    $region21: #{tpu_custom_call.1} parent=1 // pred_fallthru
      _
    // Predicated region
    $region22: #{tpu_custom_call.1} parent=1 // pred_check
      _
    $region23: #{tpu_custom_call.1} parent=1 // pred_check_branch
      %46 = sbr.rel (0) target = $region25
    $region24: #{tpu_custom_call.1} parent=1 // pred_region
      %s48 = ssub.s32 384, 384
      %49 = vsyncadd [#allocation6], %s48
      %s50 = sshll.u32 [#allocation7], 4
      %s51 = int_to_ptr.vmem [resolvable:$true] %s50
      %56 = dma.hbm_to_vmem [thread:$0]  %s5, 384, %s51, [#allocation6], 128, 128, 8
    $region25: #{tpu_custom_call.1} parent=1 // pred_fallthru
      _
    // Predicated region
    $region26: #{tpu_custom_call.1} parent=1 // pred_check
      _
    $region27: #{tpu_custom_call.1} parent=1 // pred_check_branch
      %58 = sbr.rel (0) target = $region29
    $region28: #{tpu_custom_call.1} parent=1 // pred_region
      _
    $region29: #{tpu_custom_call.1} parent=1 // pred_fallthru
      _
    // Predicated region
    $region30: #{tpu_custom_call.1} parent=1 // pred_check
      _
    $region31: #{tpu_custom_call.1} parent=1 // pred_check_branch
      %60 = sbr.rel (0) target = $region33
    $region32: #{tpu_custom_call.1} parent=1 // pred_region
      _
    $region33: #{tpu_custom_call.1} parent=1 // pred_fallthru
      _
    // Predicated region
    $region34: #{tpu_custom_call.1} parent=1 // pred_check
      _
    $region35: #{tpu_custom_call.1} parent=1 // pred_check_branch
      %62 = sbr.rel (0) target = $region37
    $region36: #{tpu_custom_call.1} parent=1 // pred_region
      _
    $region37: #{tpu_custom_call.1} parent=1 // pred_fallthru
      _
    // Predicated region
    $region38: #{tpu_custom_call.1} parent=1 // pred_check
      _
    $region39: #{tpu_custom_call.1} parent=1 // pred_check_branch
      %64 = sbr.rel (0) target = $region41
    $region40: #{tpu_custom_call.1} parent=1 // pred_region
      %65 = dma.done [#allocation3], 256
    $region41: #{tpu_custom_call.1} parent=1 // pred_fallthru
      _
    // Predicated region
    $region42: #{tpu_custom_call.1} parent=1 // pred_check
      _
    $region43: #{tpu_custom_call.1} parent=1 // pred_check_branch
      %67 = sbr.rel (0) target = $region45
    $region44: #{tpu_custom_call.1} parent=1 // pred_region
      %68 = dma.done [#allocation6], 16
    $region45: #{tpu_custom_call.1} parent=1 // pred_fallthru
      _
    // Predicated region
    $region46: #{tpu_custom_call.1} parent=1 // pred_check
      _
    $region47: #{tpu_custom_call.1} parent=1 // pred_check_branch
      %70 = sbr.rel (0) target = $region49
    $region48: #{tpu_custom_call.1} parent=1 // pred_region
      %71 = dma.done [#allocation6], 384
    $region49: #{tpu_custom_call.1} parent=1 // pred_fallthru
      _
    %v72 = vld [vmem:[%s0] sm:$0xff]
    %v73 = vld [vmem:[%s0 + $0x8] sm:$0xff]
    %v74 = vlaneseq
    %v75 = vand.u32 %v74, 127
    %76 = vset.pattern.permute.xlu0 0
    %77 = vperm.xlu0 %76, %v72
    %v78 = vpop.permute.xlu0 %77
    %79 = vset.pattern.permute.xlu0 0
    %80 = vperm.xlu0 %79, %v73
    %v81 = vpop.permute.xlu0 %80
    %vm82 = vcmp.eq.s32.totalorder %v78, %v75
    %vm83 = vcmp.eq.s32.totalorder %v81, %v75
    %vm84 = vcmp.ne.s32.totalorder %v72, 10
    %vm85 = vcmp.ne.s32.totalorder %v73, 10
    %v86 = vsel %vm84, 1, 0
    %v87 = vsel %vm85, 1, 0
    %88 = vset.pattern.permute.xlu0 0
    %89 = vperm.xlu0 %88, %v86
    %v90 = vpop.permute.xlu0 %89
    %91 = vset.pattern.permute.xlu0 0
    %92 = vperm.xlu0 %91, %v87
    %v93 = vpop.permute.xlu0 %92
    %vm94 = vcmp.eq.s32.totalorder %v90, 1
    %vm95 = vcmp.eq.s32.totalorder %v93, 1
    %vm96 = vmand %vm82, %vm94
    %vm97 = vmand %vm83, %vm95
    %v98 = vsel %vm96, 1.0, 0.0
    %v99 = vsel %vm97, 1.0, 0.0
    %v100 = vld [vmem:[#allocation2] sm:$0xff]
    %v101 = vld [vmem:[#allocation2 + $0x8] sm:$0x7]
    %v102 = vld [vmem:[%s2] sm:$0xff]
    %v103 = vld [vmem:[%s2 + $0x8] sm:$0xff]
    %v104 = vld [vmem:[%s2 + $0x10] sm:$0xf]
    %vm105 = vcmask 162816
    %v107 = vsel %vm105, %v100, 0
    %v110 = vsel %vm105, %v101, 0
    %vm112 = vcmask 1043456
    %v114 = vsel %vm112, %v104, 0
    %116 = vmatprep.subr.mxu0 0.0
    %117 = vmatpush1.msra.mxu0 0.0
    %118 = vmatprep.subr.mxu0 0.0
    %119 = vmatpush1.msra.mxu0 0.0
    %120 = vmatprep.subr.mxu0 0.0
    %121 = vmatpush1.msra.mxu0 0.0
    %122 = vmatprep.subr.mxu0 0.0
    %123 = vmatpush1.msra.mxu0 0.0
    %124 = vmatprep.subr.mxu0 0.0
    %125 = vmatpush1.msra.mxu0 0.0
    %126 = vmatprep.subr.mxu0 0.0
    %127 = vmatpush1.msra.mxu0 0.0
    %128 = vmatprep.subr.mxu0 0.0
    %129 = vmatpush1.msra.mxu0 0.0
    %130 = vmatprep.subr.mxu0 0.0
    %131 = vmatpush1.msra.mxu0 0.0
    %132 = vmatprep.subr.mxu0 0.0
    %133 = vmatpush1.msra.mxu0 0.0
    %134 = vmatprep.subr.mxu0 0.0
    %135 = vmatpush1.msra.mxu0 0.0
    %136 = vmatprep.subr.mxu0 0.0
    %137 = vmatpush1.msra.mxu0 0.0
    %138 = vmatprep.subr.mxu0 0.0
    %139 = vmatpush1.msra.mxu0 0.0
    %140 = vmatprep.subr.mxu0 0.0
    %141 = vmatpush1.msra.mxu0 0.0
    %142 = vmatprep.subr.mxu0 0.0
    %143 = vmatpush1.msra.mxu0 %v114
    %144 = vmatprep.subr.mxu0 0.0
    %145 = vmatpush1.msra.mxu0 %v103
    %146 = vmatprep.subr.mxu0 0.0
    %147 = vmatpush1.msra.mxu0 %v102
    %148 = vmatprep.subr.mxu0 0.0
    %149 = vmatpush2.msra.mxu0 0.0
    %150 = vmatprep.subr.mxu0 0.0
    %151 = vmatpush2.msra.mxu0 0.0
    %152 = vmatprep.subr.mxu0 0.0
    %153 = vmatpush2.msra.mxu0 0.0
    %154 = vmatprep.subr.mxu0 0.0
    %155 = vmatpush2.msra.mxu0 0.0
    %156 = vmatprep.subr.mxu0 0.0
    %157 = vmatpush2.msra.mxu0 0.0
    %158 = vmatprep.subr.mxu0 0.0
    %159 = vmatpush2.msra.mxu0 0.0
    %160 = vmatprep.subr.mxu0 0.0
    %161 = vmatpush2.msra.mxu0 0.0
    %162 = vmatprep.subr.mxu0 0.0
    %163 = vmatpush2.msra.mxu0 0.0
    %164 = vmatprep.subr.mxu0 0.0
    %165 = vmatpush2.msra.mxu0 0.0
    %166 = vmatprep.subr.mxu0 0.0
    %167 = vmatpush2.msra.mxu0 0.0
    %168 = vmatprep.subr.mxu0 0.0
    %169 = vmatpush2.msra.mxu0 0.0
    %170 = vmatprep.subr.mxu0 0.0
    %171 = vmatpush2.msra.mxu0 0.0
    %172 = vmatprep.subr.mxu0 0.0
    %173 = vmatpush2.msra.mxu0 0.0
    %174 = vmatprep.subr.mxu0 0.0
    %175 = vmatpush2.msra.mxu0 0.0
    %176 = vmatprep.subr.mxu0 0.0
    %177 = vmatpush2.msra.mxu0 0.0
    %178 = vmatprep.subr.mxu0 0.0
    %179 = vmatpush2.msra.mxu0 0.0
    %180 = vmatprep.mubr.f32.mxu0 0.0
    %181 = vmatmul.mubr.f32.gmra.mxu0 %v107
    %v182 = vpop.f32.mrf.mxu0
    %v183 = vadd.f32 0.0, %v182
    %v184 = vpop.f32.mrf.mxu0
    %185 = vmatprep.mubr.f32.mxu0 0.0
    %186 = vmatmul.mubr.f32.gmra.mxu0 %v110
    %v187 = vpop.f32.mrf.mxu0
    %v188 = vadd.f32 0.0, %v187
    %v189 = vpop.f32.mrf.mxu0
    %190 = vdwg.mxu0
    %v191 = vld [vmem:[#allocation5] sm:$0x1]
    %v193 = vlaneseq
    %v194 = vshrl.u32 %v193, 7
    %v195 = vsub.s32 0, %v194
    %v196 = vrot.slane %v191, %v195
    %vm198 = vcmask 89088
    %v200 = vsel %vm198, %v98, 0
    %v203 = vsel %vm198, %v99, 0
    %vm205 = vcmask 1042432
    %v207 = vsel %vm205, %v188, 0
    %209 = vmatprep.subr.mxu0 0.0
    %210 = vmatpush1.msra.mxu0 0.0
    %211 = vmatprep.subr.mxu0 0.0
    %212 = vmatpush1.msra.mxu0 0.0
    %213 = vmatprep.subr.mxu0 0.0
    %214 = vmatpush1.msra.mxu0 0.0
    %215 = vmatprep.subr.mxu0 0.0
    %216 = vmatpush1.msra.mxu0 0.0
    %217 = vmatprep.subr.mxu0 0.0
    %218 = vmatpush1.msra.mxu0 0.0
    %219 = vmatprep.subr.mxu0 0.0
    %220 = vmatpush1.msra.mxu0 0.0
    %221 = vmatprep.subr.mxu0 0.0
    %222 = vmatpush1.msra.mxu0 0.0
    %223 = vmatprep.subr.mxu0 0.0
    %224 = vmatpush1.msra.mxu0 0.0
    %225 = vmatprep.subr.mxu0 0.0
    %226 = vmatpush1.msra.mxu0 0.0
    %227 = vmatprep.subr.mxu0 0.0
    %228 = vmatpush1.msra.mxu0 0.0
    %229 = vmatprep.subr.mxu0 0.0
    %230 = vmatpush1.msra.mxu0 0.0
    %231 = vmatprep.subr.mxu0 0.0
    %232 = vmatpush1.msra.mxu0 0.0
    %233 = vmatprep.subr.mxu0 0.0
    %234 = vmatpush1.msra.mxu0 0.0
    %235 = vmatprep.subr.mxu0 0.0
    %236 = vmatpush1.msra.mxu0 0.0
    %237 = vmatprep.subr.mxu0 0.0
    %238 = vmatpush1.msra.mxu0 %v207
    %239 = vmatprep.subr.mxu0 0.0
    %240 = vmatpush1.msra.mxu0 %v183
    %241 = vmatprep.subr.mxu0 0.0
    %242 = vmatpush2.msra.mxu0 0.0
    %243 = vmatprep.subr.mxu0 0.0
    %244 = vmatpush2.msra.mxu0 0.0
    %245 = vmatprep.subr.mxu0 0.0
    %246 = vmatpush2.msra.mxu0 0.0
    %247 = vmatprep.subr.mxu0 0.0
    %248 = vmatpush2.msra.mxu0 0.0
    %249 = vmatprep.subr.mxu0 0.0
    %250 = vmatpush2.msra.mxu0 0.0
    %251 = vmatprep.subr.mxu0 0.0
    %252 = vmatpush2.msra.mxu0 0.0
    %253 = vmatprep.subr.mxu0 0.0
    %254 = vmatpush2.msra.mxu0 0.0
    %255 = vmatprep.subr.mxu0 0.0
    %256 = vmatpush2.msra.mxu0 0.0
    %257 = vmatprep.subr.mxu0 0.0
    %258 = vmatpush2.msra.mxu0 0.0
    %259 = vmatprep.subr.mxu0 0.0
    %260 = vmatpush2.msra.mxu0 0.0
    %261 = vmatprep.subr.mxu0 0.0
    %262 = vmatpush2.msra.mxu0 0.0
    %263 = vmatprep.subr.mxu0 0.0
    %264 = vmatpush2.msra.mxu0 0.0
    %265 = vmatprep.subr.mxu0 0.0
    %266 = vmatpush2.msra.mxu0 0.0
    %267 = vmatprep.subr.mxu0 0.0
    %268 = vmatpush2.msra.mxu0 0.0
    %269 = vmatprep.subr.mxu0 0.0
    %270 = vmatpush2.msra.mxu0 0.0
    %271 = vmatprep.subr.mxu0 0.0
    %272 = vmatpush2.msra.mxu0 0.0
    %273 = vmatprep.mubr.f32.mxu0 0.0
    %274 = vmatmul.mubr.f32.gmra.mxu0 %v200
    %v275 = vpop.f32.mrf.mxu0
    %v276 = vadd.f32 %v196, %v275
    %v277 = vpop.f32.mrf.mxu0
    %278 = vmatprep.mubr.f32.mxu0 0.0
    %279 = vmatmul.mubr.f32.gmra.mxu0 %v203
    %v280 = vpop.f32.mrf.mxu0
    %v281 = vadd.f32 %v196, %v280
    %v282 = vpop.f32.mrf.mxu0
    %283 = vdwg.mxu0
    %v284 = vld [vmem:[%s3] sm:$0xff]
    %v285 = vld [vmem:[%s3 + $0x8] sm:$0xff]
    %v286 = vld [vmem:[%s3 + $0x10] sm:$0xf]
    %v288 = vsel %vm105, 0.0, 0
    %v291 = vsel %vm112, %v286, 0
    %293 = vmatprep.subr.mxu0 0.0
    %294 = vmatpush1.msra.mxu0 0.0
    %295 = vmatprep.subr.mxu0 0.0
    %296 = vmatpush1.msra.mxu0 0.0
    %297 = vmatprep.subr.mxu0 0.0
    %298 = vmatpush1.msra.mxu0 0.0
    %299 = vmatprep.subr.mxu0 0.0
    %300 = vmatpush1.msra.mxu0 0.0
    %301 = vmatprep.subr.mxu0 0.0
    %302 = vmatpush1.msra.mxu0 0.0
    %303 = vmatprep.subr.mxu0 0.0
    %304 = vmatpush1.msra.mxu0 0.0
    %305 = vmatprep.subr.mxu0 0.0
    %306 = vmatpush1.msra.mxu0 0.0
    %307 = vmatprep.subr.mxu0 0.0
    %308 = vmatpush1.msra.mxu0 0.0
    %309 = vmatprep.subr.mxu0 0.0
    %310 = vmatpush1.msra.mxu0 0.0
    %311 = vmatprep.subr.mxu0 0.0
    %312 = vmatpush1.msra.mxu0 0.0
    %313 = vmatprep.subr.mxu0 0.0
    %314 = vmatpush1.msra.mxu0 0.0
    %315 = vmatprep.subr.mxu0 0.0
    %316 = vmatpush1.msra.mxu0 0.0
    %317 = vmatprep.subr.mxu0 0.0
    %318 = vmatpush1.msra.mxu0 0.0
    %319 = vmatprep.subr.mxu0 0.0
    %320 = vmatpush1.msra.mxu0 %v291
    %321 = vmatprep.subr.mxu0 0.0
    %322 = vmatpush1.msra.mxu0 %v285
    %323 = vmatprep.subr.mxu0 0.0
    %324 = vmatpush1.msra.mxu0 %v284
    %325 = vmatprep.subr.mxu0 0.0
    %326 = vmatpush2.msra.mxu0 0.0
    %327 = vmatprep.subr.mxu0 0.0
    %328 = vmatpush2.msra.mxu0 0.0
    %329 = vmatprep.subr.mxu0 0.0
    %330 = vmatpush2.msra.mxu0 0.0
    %331 = vmatprep.subr.mxu0 0.0
    %332 = vmatpush2.msra.mxu0 0.0
    %333 = vmatprep.subr.mxu0 0.0
    %334 = vmatpush2.msra.mxu0 0.0
    %335 = vmatprep.subr.mxu0 0.0
    %336 = vmatpush2.msra.mxu0 0.0
    %337 = vmatprep.subr.mxu0 0.0
    %338 = vmatpush2.msra.mxu0 0.0
    %339 = vmatprep.subr.mxu0 0.0
    %340 = vmatpush2.msra.mxu0 0.0
    %341 = vmatprep.subr.mxu0 0.0
    %342 = vmatpush2.msra.mxu0 0.0
    %343 = vmatprep.subr.mxu0 0.0
    %344 = vmatpush2.msra.mxu0 0.0
    %345 = vmatprep.subr.mxu0 0.0
    %346 = vmatpush2.msra.mxu0 0.0
    %347 = vmatprep.subr.mxu0 0.0
    %348 = vmatpush2.msra.mxu0 0.0
    %349 = vmatprep.subr.mxu0 0.0
    %350 = vmatpush2.msra.mxu0 0.0
    %351 = vmatprep.subr.mxu0 0.0
    %352 = vmatpush2.msra.mxu0 0.0
    %353 = vmatprep.subr.mxu0 0.0
    %354 = vmatpush2.msra.mxu0 0.0
    %355 = vmatprep.subr.mxu0 0.0
    %356 = vmatpush2.msra.mxu0 0.0
    %357 = vmatprep.mubr.f32.mxu0 0.0
    %358 = vmatmul.mubr.f32.gmra.mxu0 %v288
    %v359 = vpop.f32.mrf.mxu0
    %v360 = vadd.f32 0.0, %v359
    %v361 = vpop.f32.mrf.mxu0
    %362 = vdwg.mxu0
    %v363 = vadd.f32 %v276, %v360
    %v364 = vxor.u32 %v363, 2147483648
    %v365 = vmul.f32 %v364, 1.442695
    %v366 = vpow.pop %v365
    %v367 = vadd.f32 %v366, 1.0
    %v368 = vrcp.pop %v367
    %v369 = vmul.f32 1.0, %v368
    %v370 = vtanh.pop %v363
    %v371 = vmul.f32 %v369, 0.0
    %373 = vrot.lane.b32.xlu0 %v370, 68
    %v374 = vpop.permute.xlu0 %373
    %v376 = vmul.f32 %v369, %v374
    %378 = vrot.lane.b32.xlu0 %v376, 20
    %v379 = vpop.permute.xlu0 %378
    %v381 = vadd.f32 %v371, %v379
    %v382 = vtanh.pop %v381
    %384 = vrot.lane.b32.xlu0 %v382, 20
    %v385 = vpop.permute.xlu0 %384
    %v387 = vmul.f32 %v369, %v385
    %v388 = vadd.f32 %v387, 0.0
    %390 = vrot.lane.b32.xlu0 %v387, 88
    %v391 = vpop.permute.xlu0 %390
    %v392 = vsel %vm105, %v391, 0
    %394 = vmatprep.subr.mxu0 0.0
    %395 = vmatpush1.msra.mxu0 0.0
    %396 = vmatprep.subr.mxu0 0.0
    %397 = vmatpush1.msra.mxu0 0.0
    %398 = vmatprep.subr.mxu0 0.0
    %399 = vmatpush1.msra.mxu0 0.0
    %400 = vmatprep.subr.mxu0 0.0
    %401 = vmatpush1.msra.mxu0 0.0
    %402 = vmatprep.subr.mxu0 0.0
    %403 = vmatpush1.msra.mxu0 0.0
    %404 = vmatprep.subr.mxu0 0.0
    %405 = vmatpush1.msra.mxu0 0.0
    %406 = vmatprep.subr.mxu0 0.0
    %407 = vmatpush1.msra.mxu0 0.0
    %408 = vmatprep.subr.mxu0 0.0
    %409 = vmatpush1.msra.mxu0 0.0
    %410 = vmatprep.subr.mxu0 0.0
    %411 = vmatpush1.msra.mxu0 0.0
    %412 = vmatprep.subr.mxu0 0.0
    %413 = vmatpush1.msra.mxu0 0.0
    %414 = vmatprep.subr.mxu0 0.0
    %415 = vmatpush1.msra.mxu0 0.0
    %416 = vmatprep.subr.mxu0 0.0
    %417 = vmatpush1.msra.mxu0 0.0
    %418 = vmatprep.subr.mxu0 0.0
    %419 = vmatpush1.msra.mxu0 0.0
    %420 = vmatprep.subr.mxu0 0.0
    %421 = vmatpush1.msra.mxu0 %v291
    %422 = vmatprep.subr.mxu0 0.0
    %423 = vmatpush1.msra.mxu0 %v285
    %424 = vmatprep.subr.mxu0 0.0
    %425 = vmatpush1.msra.mxu0 %v284
    %426 = vmatprep.subr.mxu0 0.0
    %427 = vmatpush2.msra.mxu0 0.0
    %428 = vmatprep.subr.mxu0 0.0
    %429 = vmatpush2.msra.mxu0 0.0
    %430 = vmatprep.subr.mxu0 0.0
    %431 = vmatpush2.msra.mxu0 0.0
    %432 = vmatprep.subr.mxu0 0.0
    %433 = vmatpush2.msra.mxu0 0.0
    %434 = vmatprep.subr.mxu0 0.0
    %435 = vmatpush2.msra.mxu0 0.0
    %436 = vmatprep.subr.mxu0 0.0
    %437 = vmatpush2.msra.mxu0 0.0
    %438 = vmatprep.subr.mxu0 0.0
    %439 = vmatpush2.msra.mxu0 0.0
    %440 = vmatprep.subr.mxu0 0.0
    %441 = vmatpush2.msra.mxu0 0.0
    %442 = vmatprep.subr.mxu0 0.0
    %443 = vmatpush2.msra.mxu0 0.0
    %444 = vmatprep.subr.mxu0 0.0
    %445 = vmatpush2.msra.mxu0 0.0
    %446 = vmatprep.subr.mxu0 0.0
    %447 = vmatpush2.msra.mxu0 0.0
    %448 = vmatprep.subr.mxu0 0.0
    %449 = vmatpush2.msra.mxu0 0.0
    %450 = vmatprep.subr.mxu0 0.0
    %451 = vmatpush2.msra.mxu0 0.0
    %452 = vmatprep.subr.mxu0 0.0
    %453 = vmatpush2.msra.mxu0 0.0
    %454 = vmatprep.subr.mxu0 0.0
    %455 = vmatpush2.msra.mxu0 0.0
    %456 = vmatprep.subr.mxu0 0.0
    %457 = vmatpush2.msra.mxu0 0.0
    %458 = vmatprep.mubr.f32.mxu0 0.0
    %459 = vmatmul.mubr.f32.gmra.mxu0 %v392
    %v460 = vpop.f32.mrf.mxu0
    %v461 = vadd.f32 0.0, %v460
    %v462 = vpop.f32.mrf.mxu0
    %463 = vdwg.mxu0
    %v465 = vrot.slane %v461, 6
    %v467 = vadd.f32 %v276, %v465
    %v468 = vxor.u32 %v467, 2147483648
    %v469 = vmul.f32 %v468, 1.442695
    %v470 = vpow.pop %v469
    %v471 = vadd.f32 %v470, 1.0
    %v472 = vrcp.pop %v471
    %v473 = vmul.f32 1.0, %v472
    %v474 = vtanh.pop %v467
    %v476 = vrot.slane %v381, 6
    %v478 = vmul.f32 %v473, %v476
    %480 = vrot.lane.b32.xlu0 %v474, 68
    %v481 = vpop.permute.xlu0 %480
    %v483 = vmul.f32 %v473, %v481
    %485 = vrot.lane.b32.xlu0 %v483, 20
    %v486 = vpop.permute.xlu0 %485
    %v488 = vadd.f32 %v478, %v486
    %v489 = vtanh.pop %v488
    %491 = vrot.lane.b32.xlu0 %v489, 20
    %v492 = vpop.permute.xlu0 %491
    %v494 = vmul.f32 %v473, %v492
    %v496 = vrot.slane %v494, 2
    %v498 = vadd.f32 %v388, %v496
    %499 = vrot.lane.b32.xlu0 %v496, 88
    %v500 = vpop.permute.xlu0 %499
    %v501 = vsel %vm105, %v500, 0
    %503 = vmatprep.subr.mxu0 0.0
    %504 = vmatpush1.msra.mxu0 0.0
    %505 = vmatprep.subr.mxu0 0.0
    %506 = vmatpush1.msra.mxu0 0.0
    %507 = vmatprep.subr.mxu0 0.0
    %508 = vmatpush1.msra.mxu0 0.0
    %509 = vmatprep.subr.mxu0 0.0
    %510 = vmatpush1.msra.mxu0 0.0
    %511 = vmatprep.subr.mxu0 0.0
    %512 = vmatpush1.msra.mxu0 0.0
    %513 = vmatprep.subr.mxu0 0.0
    %514 = vmatpush1.msra.mxu0 0.0
    %515 = vmatprep.subr.mxu0 0.0
    %516 = vmatpush1.msra.mxu0 0.0
    %517 = vmatprep.subr.mxu0 0.0
    %518 = vmatpush1.msra.mxu0 0.0
    %519 = vmatprep.subr.mxu0 0.0
    %520 = vmatpush1.msra.mxu0 0.0
    %521 = vmatprep.subr.mxu0 0.0
    %522 = vmatpush1.msra.mxu0 0.0
    %523 = vmatprep.subr.mxu0 0.0
    %524 = vmatpush1.msra.mxu0 0.0
    %525 = vmatprep.subr.mxu0 0.0
    %526 = vmatpush1.msra.mxu0 0.0
    %527 = vmatprep.subr.mxu0 0.0
    %528 = vmatpush1.msra.mxu0 0.0
    %529 = vmatprep.subr.mxu0 0.0
    %530 = vmatpush1.msra.mxu0 %v291
    %531 = vmatprep.subr.mxu0 0.0
    %532 = vmatpush1.msra.mxu0 %v285
    %533 = vmatprep.subr.mxu0 0.0
    %534 = vmatpush1.msra.mxu0 %v284
    %535 = vmatprep.subr.mxu0 0.0
    %536 = vmatpush2.msra.mxu0 0.0
    %537 = vmatprep.subr.mxu0 0.0
    %538 = vmatpush2.msra.mxu0 0.0
    %539 = vmatprep.subr.mxu0 0.0
    %540 = vmatpush2.msra.mxu0 0.0
    %541 = vmatprep.subr.mxu0 0.0
    %542 = vmatpush2.msra.mxu0 0.0
    %543 = vmatprep.subr.mxu0 0.0
    %544 = vmatpush2.msra.mxu0 0.0
    %545 = vmatprep.subr.mxu0 0.0
    %546 = vmatpush2.msra.mxu0 0.0
    %547 = vmatprep.subr.mxu0 0.0
    %548 = vmatpush2.msra.mxu0 0.0
    %549 = vmatprep.subr.mxu0 0.0
    %550 = vmatpush2.msra.mxu0 0.0
    %551 = vmatprep.subr.mxu0 0.0
    %552 = vmatpush2.msra.mxu0 0.0
    %553 = vmatprep.subr.mxu0 0.0
    %554 = vmatpush2.msra.mxu0 0.0
    %555 = vmatprep.subr.mxu0 0.0
    %556 = vmatpush2.msra.mxu0 0.0
    %557 = vmatprep.subr.mxu0 0.0
    %558 = vmatpush2.msra.mxu0 0.0
    %559 = vmatprep.subr.mxu0 0.0
    %560 = vmatpush2.msra.mxu0 0.0
    %561 = vmatprep.subr.mxu0 0.0
    %562 = vmatpush2.msra.mxu0 0.0
    %563 = vmatprep.subr.mxu0 0.0
    %564 = vmatpush2.msra.mxu0 0.0
    %565 = vmatprep.subr.mxu0 0.0
    %566 = vmatpush2.msra.mxu0 0.0
    %567 = vmatprep.mubr.f32.mxu0 0.0
    %568 = vmatmul.mubr.f32.gmra.mxu0 %v501
    %v569 = vpop.f32.mrf.mxu0
    %v570 = vadd.f32 0.0, %v569
    %v571 = vpop.f32.mrf.mxu0
    %572 = vdwg.mxu0
    %v574 = vrot.slane %v570, 4
    %v576 = vadd.f32 %v276, %v574
    %v577 = vxor.u32 %v576, 2147483648
    %v578 = vmul.f32 %v577, 1.442695
    %v579 = vpow.pop %v578
    %v580 = vadd.f32 %v579, 1.0
    %v581 = vrcp.pop %v580
    %v582 = vmul.f32 1.0, %v581
    %v583 = vtanh.pop %v576
    %v585 = vrot.slane %v488, 6
    %v587 = vmul.f32 %v582, %v585
    %589 = vrot.lane.b32.xlu0 %v583, 68
    %v590 = vpop.permute.xlu0 %589
    %v592 = vmul.f32 %v582, %v590
    %594 = vrot.lane.b32.xlu0 %v592, 20
    %v595 = vpop.permute.xlu0 %594
    %v597 = vadd.f32 %v587, %v595
    %v598 = vtanh.pop %v597
    %600 = vrot.lane.b32.xlu0 %v598, 20
    %v601 = vpop.permute.xlu0 %600
    %v603 = vmul.f32 %v582, %v601
    %v605 = vrot.slane %v603, 4
    %v607 = vadd.f32 %v498, %v605
    %608 = vrot.lane.b32.xlu0 %v605, 88
    %v609 = vpop.permute.xlu0 %608
    %v610 = vsel %vm105, %v609, 0
    %612 = vmatprep.subr.mxu0 0.0
    %613 = vmatpush1.msra.mxu0 0.0
    %614 = vmatprep.subr.mxu0 0.0
    %615 = vmatpush1.msra.mxu0 0.0
    %616 = vmatprep.subr.mxu0 0.0
    %617 = vmatpush1.msra.mxu0 0.0
    %618 = vmatprep.subr.mxu0 0.0
    %619 = vmatpush1.msra.mxu0 0.0
    %620 = vmatprep.subr.mxu0 0.0
    %621 = vmatpush1.msra.mxu0 0.0
    %622 = vmatprep.subr.mxu0 0.0
    %623 = vmatpush1.msra.mxu0 0.0
    %624 = vmatprep.subr.mxu0 0.0
    %625 = vmatpush1.msra.mxu0 0.0
    %626 = vmatprep.subr.mxu0 0.0
    %627 = vmatpush1.msra.mxu0 0.0
    %628 = vmatprep.subr.mxu0 0.0
    %629 = vmatpush1.msra.mxu0 0.0
    %630 = vmatprep.subr.mxu0 0.0
    %631 = vmatpush1.msra.mxu0 0.0
    %632 = vmatprep.subr.mxu0 0.0
    %633 = vmatpush1.msra.mxu0 0.0
    %634 = vmatprep.subr.mxu0 0.0
    %635 = vmatpush1.msra.mxu0 0.0
    %636 = vmatprep.subr.mxu0 0.0
    %637 = vmatpush1.msra.mxu0 0.0
    %638 = vmatprep.subr.mxu0 0.0
    %639 = vmatpush1.msra.mxu0 %v291
    %640 = vmatprep.subr.mxu0 0.0
    %641 = vmatpush1.msra.mxu0 %v285
    %642 = vmatprep.subr.mxu0 0.0
    %643 = vmatpush1.msra.mxu0 %v284
    %644 = vmatprep.subr.mxu0 0.0
    %645 = vmatpush2.msra.mxu0 0.0
    %646 = vmatprep.subr.mxu0 0.0
    %647 = vmatpush2.msra.mxu0 0.0
    %648 = vmatprep.subr.mxu0 0.0
    %649 = vmatpush2.msra.mxu0 0.0
    %650 = vmatprep.subr.mxu0 0.0
    %651 = vmatpush2.msra.mxu0 0.0
    %652 = vmatprep.subr.mxu0 0.0
    %653 = vmatpush2.msra.mxu0 0.0
    %654 = vmatprep.subr.mxu0 0.0
    %655 = vmatpush2.msra.mxu0 0.0
    %656 = vmatprep.subr.mxu0 0.0
    %657 = vmatpush2.msra.mxu0 0.0
    %658 = vmatprep.subr.mxu0 0.0
    %659 = vmatpush2.msra.mxu0 0.0
    %660 = vmatprep.subr.mxu0 0.0
    %661 = vmatpush2.msra.mxu0 0.0
    %662 = vmatprep.subr.mxu0 0.0
    %663 = vmatpush2.msra.mxu0 0.0
    %664 = vmatprep.subr.mxu0 0.0
    %665 = vmatpush2.msra.mxu0 0.0
    %666 = vmatprep.subr.mxu0 0.0
    %667 = vmatpush2.msra.mxu0 0.0
    %668 = vmatprep.subr.mxu0 0.0
    %669 = vmatpush2.msra.mxu0 0.0
    %670 = vmatprep.subr.mxu0 0.0
    %671 = vmatpush2.msra.mxu0 0.0
    %672 = vmatprep.subr.mxu0 0.0
    %673 = vmatpush2.msra.mxu0 0.0
    %674 = vmatprep.subr.mxu0 0.0
    %675 = vmatpush2.msra.mxu0 0.0
    %676 = vmatprep.mubr.f32.mxu0 0.0
    %677 = vmatmul.mubr.f32.gmra.mxu0 %v610
    %v678 = vpop.f32.mrf.mxu0
    %v679 = vadd.f32 0.0, %v678
    %v680 = vpop.f32.mrf.mxu0
    %681 = vdwg.mxu0
    %v683 = vrot.slane %v679, 2
    %v685 = vadd.f32 %v276, %v683
    %v686 = vxor.u32 %v685, 2147483648
    %v687 = vmul.f32 %v686, 1.442695
    %v688 = vpow.pop %v687
    %v689 = vadd.f32 %v688, 1.0
    %v690 = vrcp.pop %v689
    %v691 = vmul.f32 1.0, %v690
    %v692 = vtanh.pop %v685
    %v694 = vrot.slane %v597, 6
    %v696 = vmul.f32 %v691, %v694
    %698 = vrot.lane.b32.xlu0 %v692, 68
    %v699 = vpop.permute.xlu0 %698
    %v701 = vmul.f32 %v691, %v699
    %703 = vrot.lane.b32.xlu0 %v701, 20
    %v704 = vpop.permute.xlu0 %703
    %v706 = vadd.f32 %v696, %v704
    %v707 = vtanh.pop %v706
    %709 = vrot.lane.b32.xlu0 %v707, 20
    %v710 = vpop.permute.xlu0 %709
    %v712 = vmul.f32 %v691, %v710
    %v714 = vrot.slane %v712, 6
    %v716 = vadd.f32 %v607, %v714
    %717 = vrot.lane.b32.xlu0 %v714, 88
    %v718 = vpop.permute.xlu0 %717
    %v719 = vsel %vm105, %v718, 0
    %721 = vmatprep.subr.mxu0 0.0
    %722 = vmatpush1.msra.mxu0 0.0
    %723 = vmatprep.subr.mxu0 0.0
    %724 = vmatpush1.msra.mxu0 0.0
    %725 = vmatprep.subr.mxu0 0.0
    %726 = vmatpush1.msra.mxu0 0.0
    %727 = vmatprep.subr.mxu0 0.0
    %728 = vmatpush1.msra.mxu0 0.0
    %729 = vmatprep.subr.mxu0 0.0
    %730 = vmatpush1.msra.mxu0 0.0
    %731 = vmatprep.subr.mxu0 0.0
    %732 = vmatpush1.msra.mxu0 0.0
    %733 = vmatprep.subr.mxu0 0.0
    %734 = vmatpush1.msra.mxu0 0.0
    %735 = vmatprep.subr.mxu0 0.0
    %736 = vmatpush1.msra.mxu0 0.0
    %737 = vmatprep.subr.mxu0 0.0
    %738 = vmatpush1.msra.mxu0 0.0
    %739 = vmatprep.subr.mxu0 0.0
    %740 = vmatpush1.msra.mxu0 0.0
    %741 = vmatprep.subr.mxu0 0.0
    %742 = vmatpush1.msra.mxu0 0.0
    %743 = vmatprep.subr.mxu0 0.0
    %744 = vmatpush1.msra.mxu0 0.0
    %745 = vmatprep.subr.mxu0 0.0
    %746 = vmatpush1.msra.mxu0 0.0
    %747 = vmatprep.subr.mxu0 0.0
    %748 = vmatpush1.msra.mxu0 %v291
    %749 = vmatprep.subr.mxu0 0.0
    %750 = vmatpush1.msra.mxu0 %v285
    %751 = vmatprep.subr.mxu0 0.0
    %752 = vmatpush1.msra.mxu0 %v284
    %753 = vmatprep.subr.mxu0 0.0
    %754 = vmatpush2.msra.mxu0 0.0
    %755 = vmatprep.subr.mxu0 0.0
    %756 = vmatpush2.msra.mxu0 0.0
    %757 = vmatprep.subr.mxu0 0.0
    %758 = vmatpush2.msra.mxu0 0.0
    %759 = vmatprep.subr.mxu0 0.0
    %760 = vmatpush2.msra.mxu0 0.0
    %761 = vmatprep.subr.mxu0 0.0
    %762 = vmatpush2.msra.mxu0 0.0
    %763 = vmatprep.subr.mxu0 0.0
    %764 = vmatpush2.msra.mxu0 0.0
    %765 = vmatprep.subr.mxu0 0.0
    %766 = vmatpush2.msra.mxu0 0.0
    %767 = vmatprep.subr.mxu0 0.0
    %768 = vmatpush2.msra.mxu0 0.0
    %769 = vmatprep.subr.mxu0 0.0
    %770 = vmatpush2.msra.mxu0 0.0
    %771 = vmatprep.subr.mxu0 0.0
    %772 = vmatpush2.msra.mxu0 0.0
    %773 = vmatprep.subr.mxu0 0.0
    %774 = vmatpush2.msra.mxu0 0.0
    %775 = vmatprep.subr.mxu0 0.0
    %776 = vmatpush2.msra.mxu0 0.0
    %777 = vmatprep.subr.mxu0 0.0
    %778 = vmatpush2.msra.mxu0 0.0
    %779 = vmatprep.subr.mxu0 0.0
    %780 = vmatpush2.msra.mxu0 0.0
    %781 = vmatprep.subr.mxu0 0.0
    %782 = vmatpush2.msra.mxu0 0.0
    %783 = vmatprep.subr.mxu0 0.0
    %784 = vmatpush2.msra.mxu0 0.0
    %785 = vmatprep.mubr.f32.mxu0 0.0
    %786 = vmatmul.mubr.f32.gmra.mxu0 %v719
    %v787 = vpop.f32.mrf.mxu0
    %v788 = vadd.f32 0.0, %v787
    %v789 = vpop.f32.mrf.mxu0
    %790 = vdwg.mxu0
    %v791 = vadd.f32 %v281, %v788
    %v792 = vxor.u32 %v791, 2147483648
    %v793 = vmul.f32 %v792, 1.442695
    %v794 = vpow.pop %v793
    %v795 = vadd.f32 %v794, 1.0
    %v796 = vrcp.pop %v795
    %v797 = vmul.f32 1.0, %v796
    %v798 = vtanh.pop %v791
    %v800 = vrot.slane %v706, 6
    %v802 = vmul.f32 %v797, %v800
    %804 = vrot.lane.b32.xlu0 %v798, 68
    %v805 = vpop.permute.xlu0 %804
    %v807 = vmul.f32 %v797, %v805
    %809 = vrot.lane.b32.xlu0 %v807, 20
    %v810 = vpop.permute.xlu0 %809
    %v812 = vadd.f32 %v802, %v810
    %v813 = vtanh.pop %v812
    %815 = vrot.lane.b32.xlu0 %v813, 20
    %v816 = vpop.permute.xlu0 %815
    %v818 = vmul.f32 %v797, %v816
    %v819 = vadd.f32 %v716, %v818
    %821 = vrot.lane.b32.xlu0 %v818, 88
    %v822 = vpop.permute.xlu0 %821
    %v823 = vsel %vm105, %v822, 0
    %825 = vmatprep.subr.mxu0 0.0
    %826 = vmatpush1.msra.mxu0 0.0
    %827 = vmatprep.subr.mxu0 0.0
    %828 = vmatpush1.msra.mxu0 0.0
    %829 = vmatprep.subr.mxu0 0.0
    %830 = vmatpush1.msra.mxu0 0.0
    %831 = vmatprep.subr.mxu0 0.0
    %832 = vmatpush1.msra.mxu0 0.0
    %833 = vmatprep.subr.mxu0 0.0
    %834 = vmatpush1.msra.mxu0 0.0
    %835 = vmatprep.subr.mxu0 0.0
    %836 = vmatpush1.msra.mxu0 0.0
    %837 = vmatprep.subr.mxu0 0.0
    %838 = vmatpush1.msra.mxu0 0.0
    %839 = vmatprep.subr.mxu0 0.0
    %840 = vmatpush1.msra.mxu0 0.0
    %841 = vmatprep.subr.mxu0 0.0
    %842 = vmatpush1.msra.mxu0 0.0
    %843 = vmatprep.subr.mxu0 0.0
    %844 = vmatpush1.msra.mxu0 0.0
    %845 = vmatprep.subr.mxu0 0.0
    %846 = vmatpush1.msra.mxu0 0.0
    %847 = vmatprep.subr.mxu0 0.0
    %848 = vmatpush1.msra.mxu0 0.0
    %849 = vmatprep.subr.mxu0 0.0
    %850 = vmatpush1.msra.mxu0 0.0
    %851 = vmatprep.subr.mxu0 0.0
    %852 = vmatpush1.msra.mxu0 %v291
    %853 = vmatprep.subr.mxu0 0.0
    %854 = vmatpush1.msra.mxu0 %v285
    %855 = vmatprep.subr.mxu0 0.0
    %856 = vmatpush1.msra.mxu0 %v284
    %857 = vmatprep.subr.mxu0 0.0
    %858 = vmatpush2.msra.mxu0 0.0
    %859 = vmatprep.subr.mxu0 0.0
    %860 = vmatpush2.msra.mxu0 0.0
    %861 = vmatprep.subr.mxu0 0.0
    %862 = vmatpush2.msra.mxu0 0.0
    %863 = vmatprep.subr.mxu0 0.0
    %864 = vmatpush2.msra.mxu0 0.0
    %865 = vmatprep.subr.mxu0 0.0
    %866 = vmatpush2.msra.mxu0 0.0
    %867 = vmatprep.subr.mxu0 0.0
    %868 = vmatpush2.msra.mxu0 0.0
    %869 = vmatprep.subr.mxu0 0.0
    %870 = vmatpush2.msra.mxu0 0.0
    %871 = vmatprep.subr.mxu0 0.0
    %872 = vmatpush2.msra.mxu0 0.0
    %873 = vmatprep.subr.mxu0 0.0
    %874 = vmatpush2.msra.mxu0 0.0
    %875 = vmatprep.subr.mxu0 0.0
    %876 = vmatpush2.msra.mxu0 0.0
    %877 = vmatprep.subr.mxu0 0.0
    %878 = vmatpush2.msra.mxu0 0.0
    %879 = vmatprep.subr.mxu0 0.0
    %880 = vmatpush2.msra.mxu0 0.0
    %881 = vmatprep.subr.mxu0 0.0
    %882 = vmatpush2.msra.mxu0 0.0
    %883 = vmatprep.subr.mxu0 0.0
    %884 = vmatpush2.msra.mxu0 0.0
    %885 = vmatprep.subr.mxu0 0.0
    %886 = vmatpush2.msra.mxu0 0.0
    %887 = vmatprep.subr.mxu0 0.0
    %888 = vmatpush2.msra.mxu0 0.0
    %889 = vmatprep.mubr.f32.mxu0 0.0
    %890 = vmatmul.mubr.f32.gmra.mxu0 %v823
    %v891 = vpop.f32.mrf.mxu0
    %v892 = vadd.f32 0.0, %v891
    %v893 = vpop.f32.mrf.mxu0
    %894 = vdwg.mxu0
    %v896 = vrot.slane %v892, 6
    %v898 = vadd.f32 %v281, %v896
    %v899 = vxor.u32 %v898, 2147483648
    %v900 = vmul.f32 %v899, 1.442695
    %v901 = vpow.pop %v900
    %v902 = vadd.f32 %v901, 1.0
    %v903 = vrcp.pop %v902
    %v904 = vmul.f32 1.0, %v903
    %v905 = vtanh.pop %v898
    %v907 = vrot.slane %v812, 6
    %v909 = vmul.f32 %v904, %v907
    %911 = vrot.lane.b32.xlu0 %v905, 68
    %v912 = vpop.permute.xlu0 %911
    %v914 = vmul.f32 %v904, %v912
    %916 = vrot.lane.b32.xlu0 %v914, 20
    %v917 = vpop.permute.xlu0 %916
    %v919 = vadd.f32 %v909, %v917
    %v920 = vtanh.pop %v919
    %922 = vrot.lane.b32.xlu0 %v920, 20
    %v923 = vpop.permute.xlu0 %922
    %v925 = vmul.f32 %v904, %v923
    %v927 = vrot.slane %v925, 2
    %v929 = vadd.f32 %v819, %v927
    %930 = vrot.lane.b32.xlu0 %v927, 88
    %v931 = vpop.permute.xlu0 %930
    %v932 = vsel %vm105, %v931, 0
    %934 = vmatprep.subr.mxu0 0.0
    %935 = vmatpush1.msra.mxu0 0.0
    %936 = vmatprep.subr.mxu0 0.0
    %937 = vmatpush1.msra.mxu0 0.0
    %938 = vmatprep.subr.mxu0 0.0
    %939 = vmatpush1.msra.mxu0 0.0
    %940 = vmatprep.subr.mxu0 0.0
    %941 = vmatpush1.msra.mxu0 0.0
    %942 = vmatprep.subr.mxu0 0.0
    %943 = vmatpush1.msra.mxu0 0.0
    %944 = vmatprep.subr.mxu0 0.0
    %945 = vmatpush1.msra.mxu0 0.0
    %946 = vmatprep.subr.mxu0 0.0
    %947 = vmatpush1.msra.mxu0 0.0
    %948 = vmatprep.subr.mxu0 0.0
    %949 = vmatpush1.msra.mxu0 0.0
    %950 = vmatprep.subr.mxu0 0.0
    %951 = vmatpush1.msra.mxu0 0.0
    %952 = vmatprep.subr.mxu0 0.0
    %953 = vmatpush1.msra.mxu0 0.0
    %954 = vmatprep.subr.mxu0 0.0
    %955 = vmatpush1.msra.mxu0 0.0
    %956 = vmatprep.subr.mxu0 0.0
    %957 = vmatpush1.msra.mxu0 0.0
    %958 = vmatprep.subr.mxu0 0.0
    %959 = vmatpush1.msra.mxu0 0.0
    %960 = vmatprep.subr.mxu0 0.0
    %961 = vmatpush1.msra.mxu0 %v291
    %962 = vmatprep.subr.mxu0 0.0
    %963 = vmatpush1.msra.mxu0 %v285
    %964 = vmatprep.subr.mxu0 0.0
    %965 = vmatpush1.msra.mxu0 %v284
    %966 = vmatprep.subr.mxu0 0.0
    %967 = vmatpush2.msra.mxu0 0.0
    %968 = vmatprep.subr.mxu0 0.0
    %969 = vmatpush2.msra.mxu0 0.0
    %970 = vmatprep.subr.mxu0 0.0
    %971 = vmatpush2.msra.mxu0 0.0
    %972 = vmatprep.subr.mxu0 0.0
    %973 = vmatpush2.msra.mxu0 0.0
    %974 = vmatprep.subr.mxu0 0.0
    %975 = vmatpush2.msra.mxu0 0.0
    %976 = vmatprep.subr.mxu0 0.0
    %977 = vmatpush2.msra.mxu0 0.0
    %978 = vmatprep.subr.mxu0 0.0
    %979 = vmatpush2.msra.mxu0 0.0
    %980 = vmatprep.subr.mxu0 0.0
    %981 = vmatpush2.msra.mxu0 0.0
    %982 = vmatprep.subr.mxu0 0.0
    %983 = vmatpush2.msra.mxu0 0.0
    %984 = vmatprep.subr.mxu0 0.0
    %985 = vmatpush2.msra.mxu0 0.0
    %986 = vmatprep.subr.mxu0 0.0
    %987 = vmatpush2.msra.mxu0 0.0
    %988 = vmatprep.subr.mxu0 0.0
    %989 = vmatpush2.msra.mxu0 0.0
    %990 = vmatprep.subr.mxu0 0.0
    %991 = vmatpush2.msra.mxu0 0.0
    %992 = vmatprep.subr.mxu0 0.0
    %993 = vmatpush2.msra.mxu0 0.0
    %994 = vmatprep.subr.mxu0 0.0
    %995 = vmatpush2.msra.mxu0 0.0
    %996 = vmatprep.subr.mxu0 0.0
    %997 = vmatpush2.msra.mxu0 0.0
    %998 = vmatprep.mubr.f32.mxu0 0.0
    %999 = vmatmul.mubr.f32.gmra.mxu0 %v932
    %v1000 = vpop.f32.mrf.mxu0
    %v1001 = vadd.f32 0.0, %v1000
    %v1002 = vpop.f32.mrf.mxu0
    %1003 = vdwg.mxu0
    %v1005 = vrot.slane %v1001, 4
    %v1007 = vadd.f32 %v281, %v1005
    %v1008 = vxor.u32 %v1007, 2147483648
    %v1009 = vmul.f32 %v1008, 1.442695
    %v1010 = vpow.pop %v1009
    %v1011 = vadd.f32 %v1010, 1.0
    %v1012 = vrcp.pop %v1011
    %v1013 = vmul.f32 1.0, %v1012
    %v1014 = vtanh.pop %v1007
    %v1016 = vrot.slane %v919, 6
    %v1018 = vmul.f32 %v1013, %v1016
    %1020 = vrot.lane.b32.xlu0 %v1014, 68
    %v1021 = vpop.permute.xlu0 %1020
    %v1023 = vmul.f32 %v1013, %v1021
    %1025 = vrot.lane.b32.xlu0 %v1023, 20
    %v1026 = vpop.permute.xlu0 %1025
    %v1028 = vadd.f32 %v1018, %v1026
    %v1029 = vtanh.pop %v1028
    %1031 = vrot.lane.b32.xlu0 %v1029, 20
    %v1032 = vpop.permute.xlu0 %1031
    %v1034 = vmul.f32 %v1013, %v1032
    %v1036 = vrot.slane %v1034, 4
    %v1038 = vadd.f32 %v929, %v1036
    %1039 = vrot.lane.b32.xlu0 %v1036, 88
    %v1040 = vpop.permute.xlu0 %1039
    %v1041 = vsel %vm105, %v1040, 0
    %1043 = vmatprep.subr.mxu0 0.0
    %1044 = vmatpush1.msra.mxu0 0.0
    %1045 = vmatprep.subr.mxu0 0.0
    %1046 = vmatpush1.msra.mxu0 0.0
    %1047 = vmatprep.subr.mxu0 0.0
    %1048 = vmatpush1.msra.mxu0 0.0
    %1049 = vmatprep.subr.mxu0 0.0
    %1050 = vmatpush1.msra.mxu0 0.0
    %1051 = vmatprep.subr.mxu0 0.0
    %1052 = vmatpush1.msra.mxu0 0.0
    %1053 = vmatprep.subr.mxu0 0.0
    %1054 = vmatpush1.msra.mxu0 0.0
    %1055 = vmatprep.subr.mxu0 0.0
    %1056 = vmatpush1.msra.mxu0 0.0
    %1057 = vmatprep.subr.mxu0 0.0
    %1058 = vmatpush1.msra.mxu0 0.0
    %1059 = vmatprep.subr.mxu0 0.0
    %1060 = vmatpush1.msra.mxu0 0.0
    %1061 = vmatprep.subr.mxu0 0.0
    %1062 = vmatpush1.msra.mxu0 0.0
    %1063 = vmatprep.subr.mxu0 0.0
    %1064 = vmatpush1.msra.mxu0 0.0
    %1065 = vmatprep.subr.mxu0 0.0
    %1066 = vmatpush1.msra.mxu0 0.0
    %1067 = vmatprep.subr.mxu0 0.0
    %1068 = vmatpush1.msra.mxu0 0.0
    %1069 = vmatprep.subr.mxu0 0.0
    %1070 = vmatpush1.msra.mxu0 %v291
    %1071 = vmatprep.subr.mxu0 0.0
    %1072 = vmatpush1.msra.mxu0 %v285
    %1073 = vmatprep.subr.mxu0 0.0
    %1074 = vmatpush1.msra.mxu0 %v284
    %1075 = vmatprep.subr.mxu0 0.0
    %1076 = vmatpush2.msra.mxu0 0.0
    %1077 = vmatprep.subr.mxu0 0.0
    %1078 = vmatpush2.msra.mxu0 0.0
    %1079 = vmatprep.subr.mxu0 0.0
    %1080 = vmatpush2.msra.mxu0 0.0
    %1081 = vmatprep.subr.mxu0 0.0
    %1082 = vmatpush2.msra.mxu0 0.0
    %1083 = vmatprep.subr.mxu0 0.0
    %1084 = vmatpush2.msra.mxu0 0.0
    %1085 = vmatprep.subr.mxu0 0.0
    %1086 = vmatpush2.msra.mxu0 0.0
    %1087 = vmatprep.subr.mxu0 0.0
    %1088 = vmatpush2.msra.mxu0 0.0
    %1089 = vmatprep.subr.mxu0 0.0
    %1090 = vmatpush2.msra.mxu0 0.0
    %1091 = vmatprep.subr.mxu0 0.0
    %1092 = vmatpush2.msra.mxu0 0.0
    %1093 = vmatprep.subr.mxu0 0.0
    %1094 = vmatpush2.msra.mxu0 0.0
    %1095 = vmatprep.subr.mxu0 0.0
    %1096 = vmatpush2.msra.mxu0 0.0
    %1097 = vmatprep.subr.mxu0 0.0
    %1098 = vmatpush2.msra.mxu0 0.0
    %1099 = vmatprep.subr.mxu0 0.0
    %1100 = vmatpush2.msra.mxu0 0.0
    %1101 = vmatprep.subr.mxu0 0.0
    %1102 = vmatpush2.msra.mxu0 0.0
    %1103 = vmatprep.subr.mxu0 0.0
    %1104 = vmatpush2.msra.mxu0 0.0
    %1105 = vmatprep.subr.mxu0 0.0
    %1106 = vmatpush2.msra.mxu0 0.0
    %1107 = vmatprep.mubr.f32.mxu0 0.0
    %1108 = vmatmul.mubr.f32.gmra.mxu0 %v1041
    %v1109 = vpop.f32.mrf.mxu0
    %v1110 = vadd.f32 0.0, %v1109
    %v1111 = vpop.f32.mrf.mxu0
    %1112 = vdwg.mxu0
    %v1114 = vrot.slane %v1110, 2
    %v1116 = vadd.f32 %v281, %v1114
    %v1117 = vxor.u32 %v1116, 2147483648
    %v1118 = vmul.f32 %v1117, 1.442695
    %v1119 = vpow.pop %v1118
    %v1120 = vadd.f32 %v1119, 1.0
    %v1121 = vrcp.pop %v1120
    %v1122 = vmul.f32 1.0, %v1121
    %v1123 = vtanh.pop %v1116
    %v1125 = vrot.slane %v1028, 6
    %v1127 = vmul.f32 %v1122, %v1125
    %1129 = vrot.lane.b32.xlu0 %v1123, 68
    %v1130 = vpop.permute.xlu0 %1129
    %v1132 = vmul.f32 %v1122, %v1130
    %1134 = vrot.lane.b32.xlu0 %v1132, 20
    %v1135 = vpop.permute.xlu0 %1134
    %v1137 = vadd.f32 %v1127, %v1135
    %v1138 = vtanh.pop %v1137
    %1140 = vrot.lane.b32.xlu0 %v1138, 20
    %v1141 = vpop.permute.xlu0 %1140
    %v1143 = vmul.f32 %v1122, %v1141
    %v1145 = vrot.slane %v1143, 6
    %v1147 = vadd.f32 %v1038, %v1145
    %v1148 = vld [vmem:[#allocation7] sm:$0xff]
    %v1149 = vld [vmem:[#allocation7 + $0x8] sm:$0xff]
    %v1150 = vld [vmem:[#allocation7 + $0x10] sm:$0xf]
    %v1151 = vld [vmem:[%s6] sm:$0x1]
    %v1153 = vlaneseq
    %v1154 = vshrl.u32 %v1153, 7
    %v1155 = vsub.s32 0, %v1154
    %v1156 = vrot.slane %v1151, %v1155
    %1159 = vrot.lane.b32.xlu0 %v1147, 88
    %v1160 = vpop.permute.xlu0 %1159
    %v1161 = vsel %vm105, %v1160, 0
    %v1164 = vsel %vm112, %v1150, 0
    %1166 = vmatprep.subr.mxu0 0.0
    %1167 = vmatpush1.msra.mxu0 0.0
    %1168 = vmatprep.subr.mxu0 0.0
    %1169 = vmatpush1.msra.mxu0 0.0
    %1170 = vmatprep.subr.mxu0 0.0
    %1171 = vmatpush1.msra.mxu0 0.0
    %1172 = vmatprep.subr.mxu0 0.0
    %1173 = vmatpush1.msra.mxu0 0.0
    %1174 = vmatprep.subr.mxu0 0.0
    %1175 = vmatpush1.msra.mxu0 0.0
    %1176 = vmatprep.subr.mxu0 0.0
    %1177 = vmatpush1.msra.mxu0 0.0
    %1178 = vmatprep.subr.mxu0 0.0
    %1179 = vmatpush1.msra.mxu0 0.0
    %1180 = vmatprep.subr.mxu0 0.0
    %1181 = vmatpush1.msra.mxu0 0.0
    %1182 = vmatprep.subr.mxu0 0.0
    %1183 = vmatpush1.msra.mxu0 0.0
    %1184 = vmatprep.subr.mxu0 0.0
    %1185 = vmatpush1.msra.mxu0 0.0
    %1186 = vmatprep.subr.mxu0 0.0
    %1187 = vmatpush1.msra.mxu0 0.0
    %1188 = vmatprep.subr.mxu0 0.0
    %1189 = vmatpush1.msra.mxu0 0.0
    %1190 = vmatprep.subr.mxu0 0.0
    %1191 = vmatpush1.msra.mxu0 0.0
    %1192 = vmatprep.subr.mxu0 0.0
    %1193 = vmatpush1.msra.mxu0 %v1164
    %1194 = vmatprep.subr.mxu0 0.0
    %1195 = vmatpush1.msra.mxu0 %v1149
    %1196 = vmatprep.subr.mxu0 0.0
    %1197 = vmatpush1.msra.mxu0 %v1148
    %1198 = vmatprep.subr.mxu0 0.0
    %1199 = vmatpush2.msra.mxu0 0.0
    %1200 = vmatprep.subr.mxu0 0.0
    %1201 = vmatpush2.msra.mxu0 0.0
    %1202 = vmatprep.subr.mxu0 0.0
    %1203 = vmatpush2.msra.mxu0 0.0
    %1204 = vmatprep.subr.mxu0 0.0
    %1205 = vmatpush2.msra.mxu0 0.0
    %1206 = vmatprep.subr.mxu0 0.0
    %1207 = vmatpush2.msra.mxu0 0.0
    %1208 = vmatprep.subr.mxu0 0.0
    %1209 = vmatpush2.msra.mxu0 0.0
    %1210 = vmatprep.subr.mxu0 0.0
    %1211 = vmatpush2.msra.mxu0 0.0
    %1212 = vmatprep.subr.mxu0 0.0
    %1213 = vmatpush2.msra.mxu0 0.0
    %1214 = vmatprep.subr.mxu0 0.0
    %1215 = vmatpush2.msra.mxu0 0.0
    %1216 = vmatprep.subr.mxu0 0.0
    %1217 = vmatpush2.msra.mxu0 0.0
    %1218 = vmatprep.subr.mxu0 0.0
    %1219 = vmatpush2.msra.mxu0 0.0
    %1220 = vmatprep.subr.mxu0 0.0
    %1221 = vmatpush2.msra.mxu0 0.0
    %1222 = vmatprep.subr.mxu0 0.0
    %1223 = vmatpush2.msra.mxu0 0.0
    %1224 = vmatprep.subr.mxu0 0.0
    %1225 = vmatpush2.msra.mxu0 0.0
    %1226 = vmatprep.subr.mxu0 0.0
    %1227 = vmatpush2.msra.mxu0 0.0
    %1228 = vmatprep.subr.mxu0 0.0
    %1229 = vmatpush2.msra.mxu0 0.0
    %1230 = vmatprep.mubr.f32.mxu0 0.0
    %1231 = vmatmul.mubr.f32.gmra.mxu0 %v1161
    %v1232 = vpop.f32.mrf.mxu0
    %v1233 = vadd.f32 %v1156, %v1232
    %v1234 = vpop.f32.mrf.mxu0
    %1235 = vdwg.mxu0
    %v1236 = vmax.f32 %v1233, 0.0
    %v1237 = vld [vmem:[%s7] sm:$0xff]
    %v1238 = vld [vmem:[%s7 + $0x8] sm:$0xff]
    %v1239 = vld [vmem:[%s7 + $0x10] sm:$0xf]
    %v1240 = vld [vmem:[%s8] sm:$0x1]
    %v1242 = vlaneseq
    %v1243 = vshrl.u32 %v1242, 7
    %v1244 = vsub.s32 0, %v1243
    %v1245 = vrot.slane %v1240, %v1244
    %v1248 = vsel %vm105, %v1236, 0
    %v1251 = vsel %vm112, %v1239, 0
    %1253 = vmatprep.subr.mxu0 0.0
    %1254 = vmatpush1.msra.mxu0 0.0
    %1255 = vmatprep.subr.mxu0 0.0
    %1256 = vmatpush1.msra.mxu0 0.0
    %1257 = vmatprep.subr.mxu0 0.0
    %1258 = vmatpush1.msra.mxu0 0.0
    %1259 = vmatprep.subr.mxu0 0.0
    %1260 = vmatpush1.msra.mxu0 0.0
    %1261 = vmatprep.subr.mxu0 0.0
    %1262 = vmatpush1.msra.mxu0 0.0
    %1263 = vmatprep.subr.mxu0 0.0
    %1264 = vmatpush1.msra.mxu0 0.0
    %1265 = vmatprep.subr.mxu0 0.0
    %1266 = vmatpush1.msra.mxu0 0.0
    %1267 = vmatprep.subr.mxu0 0.0
    %1268 = vmatpush1.msra.mxu0 0.0
    %1269 = vmatprep.subr.mxu0 0.0
    %1270 = vmatpush1.msra.mxu0 0.0
    %1271 = vmatprep.subr.mxu0 0.0
    %1272 = vmatpush1.msra.mxu0 0.0
    %1273 = vmatprep.subr.mxu0 0.0
    %1274 = vmatpush1.msra.mxu0 0.0
    %1275 = vmatprep.subr.mxu0 0.0
    %1276 = vmatpush1.msra.mxu0 0.0
    %1277 = vmatprep.subr.mxu0 0.0
    %1278 = vmatpush1.msra.mxu0 0.0
    %1279 = vmatprep.subr.mxu0 0.0
    %1280 = vmatpush1.msra.mxu0 %v1251
    %1281 = vmatprep.subr.mxu0 0.0
    %1282 = vmatpush1.msra.mxu0 %v1238
    %1283 = vmatprep.subr.mxu0 0.0
    %1284 = vmatpush1.msra.mxu0 %v1237
    %1285 = vmatprep.subr.mxu0 0.0
    %1286 = vmatpush2.msra.mxu0 0.0
    %1287 = vmatprep.subr.mxu0 0.0
    %1288 = vmatpush2.msra.mxu0 0.0
    %1289 = vmatprep.subr.mxu0 0.0
    %1290 = vmatpush2.msra.mxu0 0.0
    %1291 = vmatprep.subr.mxu0 0.0
    %1292 = vmatpush2.msra.mxu0 0.0
    %1293 = vmatprep.subr.mxu0 0.0
    %1294 = vmatpush2.msra.mxu0 0.0
    %1295 = vmatprep.subr.mxu0 0.0
    %1296 = vmatpush2.msra.mxu0 0.0
    %1297 = vmatprep.subr.mxu0 0.0
    %1298 = vmatpush2.msra.mxu0 0.0
    %1299 = vmatprep.subr.mxu0 0.0
    %1300 = vmatpush2.msra.mxu0 0.0
    %1301 = vmatprep.subr.mxu0 0.0
    %1302 = vmatpush2.msra.mxu0 0.0
    %1303 = vmatprep.subr.mxu0 0.0
    %1304 = vmatpush2.msra.mxu0 0.0
    %1305 = vmatprep.subr.mxu0 0.0
    %1306 = vmatpush2.msra.mxu0 0.0
    %1307 = vmatprep.subr.mxu0 0.0
    %1308 = vmatpush2.msra.mxu0 0.0
    %1309 = vmatprep.subr.mxu0 0.0
    %1310 = vmatpush2.msra.mxu0 0.0
    %1311 = vmatprep.subr.mxu0 0.0
    %1312 = vmatpush2.msra.mxu0 0.0
    %1313 = vmatprep.subr.mxu0 0.0
    %1314 = vmatpush2.msra.mxu0 0.0
    %1315 = vmatprep.subr.mxu0 0.0
    %1316 = vmatpush2.msra.mxu0 0.0
    %1317 = vmatprep.mubr.f32.mxu0 0.0
    %1318 = vmatmul.mubr.f32.gmra.mxu0 %v1248
    %v1319 = vpop.f32.mrf.mxu0
    %v1320 = vadd.f32 %v1245, %v1319
    %v1321 = vpop.f32.mrf.mxu0
    %1322 = vdwg.mxu0
    %vm1323 = vcmask 33792
    %1324 = vst.msk [vmem:[#allocation8] sm:$0x3] %vm1323, %v1320
    // Predicated region
    $region50: #{tpu_custom_call.1} parent=1 // pred_check
      _
    $region51: #{tpu_custom_call.1} parent=1 // pred_check_branch
      %1326 = sbr.rel (0) target = $region53
    $region52: #{tpu_custom_call.1} parent=1 // pred_region
      %s1328 = ssub.s32 32, 32
      %1329 = vsyncadd [#allocation4], %s1328
      %s1331 = sshll.u32 [#allocation8], 4
      %s1332 = int_to_ptr.vmem [resolvable:$true] %s1331
      %1334 = dma.vmem_to_hbm [thread:$0]  %s1332, 32, %s9, [#allocation4]
    $region53: #{tpu_custom_call.1} parent=1 // pred_fallthru
      _
    // Predicated region
    $region54: #{tpu_custom_call.1} parent=1 // pred_check
      _
    $region55: #{tpu_custom_call.1} parent=1 // pred_check_branch
      %1336 = sbr.rel (0) target = $region57
    $region56: #{tpu_custom_call.1} parent=1 // pred_region
      %1337 = dma.done [#allocation4], 32
    $region57: #{tpu_custom_call.1} parent=1 // pred_fallthru
      _
    %1338 = vsyncpa [#allocation3], 1
    %1339 = vsyncpa [#allocation6], 1
    %1340 = vsyncpa [#allocation4], 1

</llo_original>
